<compile_context>
chip_gen: v7x
topology: tpu7x:2x2x1
jax: 0.10.0
libtpu: 0.0.40
codegen_flags: <defaults>
</compile_context>

<pallas_src>
import functools

import jax
import jax.numpy as jnp
from jax import lax
from jax.experimental import pallas as pl
from jax.experimental.pallas import tpu as pltpu

INPUT_SIZE = 2
HIDDEN_SIZE = 64
NUM_LAYERS = 2      # fixed to 2 (matches the module); layers are unrolled in the kernel
OUTPUT_SIZE = 2


def _lstm_fc_kernel(x_ref,            # (T, B, D_in)   time-major input
                    wih0_ref,         # (D_in, 4H)
                    whh0_ref,         # (H,    4H)
                    b0_ref,           # (1,    4H)  = bias_ih_l0 + bias_hh_l0
                    wc1_ref,          # (2H,   4H)  = concat([W_ih_l1.T, W_hh_l1.T], 0)
                    b1_ref,           # (1,    4H)  = bias_ih_l1 + bias_hh_l1
                    wfc_ref,          # (H,    O)
                    bfc_ref,          # (1,    O)
                    out_ref,          # (B,    O)
                    gx0_ref):         # scratch (T, B, 4H): precomputed layer-0 x-proj
    T, B, Din = x_ref.shape
    H = whh0_ref.shape[0]
    G = 4 * H

    # ---- hoisted layer-0 input projection: one big parallel matmul ----------
    # (T*B, Din) @ (Din, 4H) + b0  ->  (T, B, 4H), done once, off the serial path.
    x_flat = x_ref[...].reshape(T * B, Din)
    gx0_ref[...] = (
        jnp.dot(x_flat, wih0_ref[...], preferred_element_type=jnp.float32)
        + b0_ref[...]
    ).reshape(T, B, G)

    # ---- hoisted bias broadcast for layer 1 (no per-iteration broadcast) ----
    b1b = jnp.broadcast_to(b1_ref[...], (B, G))

    def activations(gates):
        # PyTorch gate order i, f, g, o ; i and f are contiguous -> one EUP push.
        sif = jax.nn.sigmoid(gates[:, 0:2 * H])
        i = sif[:, 0:H]
        f = sif[:, H:2 * H]
        g = jnp.tanh(gates[:, 2 * H:3 * H])
        o = jax.nn.sigmoid(gates[:, 3 * H:4 * H])
        return i, f, g, o

    def step(t, carry):
        h0, c0, h1, c1 = carry

        # ----- layer 0: input projection precomputed; only recurrent matmul -----
        gates0 = gx0_ref[t] + jnp.dot(h0, whh0_ref[...],
                                      preferred_element_type=jnp.float32)
        i0, f0, g0, o0 = activations(gates0)
        c0 = f0 * c0 + i0 * g0
        h0 = o0 * jnp.tanh(c0)

        # ----- layer 1: fused [x, h] matmul with K = 2H = 128 -----
        xh1 = jnp.concatenate([h0, h1], axis=1)            # (B, 2H)
        gates1 = jnp.dot(xh1, wc1_ref[...],
                         preferred_element_type=jnp.float32) + b1b
        i1, f1, g1, o1 = activations(gates1)
        c1 = f1 * c1 + i1 * g1
        h1 = o1 * jnp.tanh(c1)

        return (h0, c0, h1, c1)

    zeros = jnp.zeros((B, H), jnp.float32)
    _, _, h1, _ = lax.fori_loop(0, T, step, (zeros, zeros, zeros, zeros),
                                unroll=True)

    # Final fc on the last timestep of the top layer.
    out_ref[...] = (jnp.dot(h1, wfc_ref[...], preferred_element_type=jnp.float32)
                    + bfc_ref[...])


def init_params(key, input_size=INPUT_SIZE, hidden_size=HIDDEN_SIZE,
                output_size=OUTPUT_SIZE):
    """Deterministic init mirroring PyTorch's U(-1/sqrt(H), 1/sqrt(H))."""
    k = 1.0 / jnp.sqrt(jnp.float32(hidden_size))
    keys = jax.random.split(key, 10)
    u = lambda kk, shape: jax.random.uniform(kk, shape, jnp.float32, -k, k)
    H4 = 4 * hidden_size
    return {
        "weight_ih_l0": u(keys[0], (H4, input_size)),
        "weight_hh_l0": u(keys[1], (H4, hidden_size)),
        "bias_ih_l0":   u(keys[2], (H4,)),
        "bias_hh_l0":   u(keys[3], (H4,)),
        "weight_ih_l1": u(keys[4], (H4, hidden_size)),
        "weight_hh_l1": u(keys[5], (H4, hidden_size)),
        "bias_ih_l1":   u(keys[6], (H4,)),
        "bias_hh_l1":   u(keys[7], (H4,)),
        "fc_weight":    u(keys[8], (output_size, hidden_size)),
        "fc_bias":      u(keys[9], (output_size,)),
    }


@functools.partial(jax.jit, static_argnames=())
def nasdaq_predictor_forward(x, params):
    """x: (batch, seq, input_size) float32 -> (batch, output_size) float32."""
    B, T, D = x.shape
    H = params["weight_hh_l0"].shape[1]
    O = params["fc_weight"].shape[0]

    # Glue: time-major transpose + pre-transpose weights, fold bias pairs,
    # and pre-concatenate layer-1 weights for the fused K = 2H matmul.
    x_tm = jnp.transpose(x, (1, 0, 2)).astype(jnp.float32)        # (T, B, D)
    wih0 = params["weight_ih_l0"].T                               # (D, 4H)
    whh0 = params["weight_hh_l0"].T                               # (H, 4H)
    b0 = (params["bias_ih_l0"] + params["bias_hh_l0"])[None, :]   # (1, 4H)
    wc1 = jnp.concatenate([params["weight_ih_l1"].T,
                           params["weight_hh_l1"].T], axis=0)     # (2H, 4H)
    b1 = (params["bias_ih_l1"] + params["bias_hh_l1"])[None, :]   # (1, 4H)
    wfc = params["fc_weight"].T                                   # (H, O)
    bfc = params["fc_bias"][None, :]                              # (1, O)

    vmem = pl.BlockSpec(memory_space=pltpu.MemorySpace.VMEM)      # whole-array in VMEM
    # TODO(synk): if B grows, add a batch grid axis with dimension_semantics=
    # ("parallel",) so v7x's two TensorCores each take half the batch.
    return pl.pallas_call(
        _lstm_fc_kernel,
        out_shape=jax.ShapeDtypeStruct((B, O), jnp.float32),
        in_specs=[vmem] * 8,
        out_specs=vmem,
        scratch_shapes=[pltpu.VMEM((T, B, 4 * H), jnp.float32)],
    )(x_tm, wih0, whh0, b0, wc1, b1, wfc, bfc)


def _reference_forward(x, params):
    """Pure-JAX reference of the PyTorch forward (for correctness check)."""
    B, T, D = x.shape
    H = HIDDEN_SIZE

    def cell(x_t, h, c, wih, whh, bih, bhh):
        gates = x_t @ wih.T + bih + h @ whh.T + bhh
        i, f, g, o = jnp.split(gates, 4, axis=-1)
        c_new = jax.nn.sigmoid(f) * c + jax.nn.sigmoid(i) * jnp.tanh(g)
        h_new = jax.nn.sigmoid(o) * jnp.tanh(c_new)
        return h_new, c_new

    h0 = c0 = h1 = c1 = jnp.zeros((B, H), jnp.float32)
    for t in range(T):
        h0, c0 = cell(x[:, t, :], h0, c0, params["weight_ih_l0"],
                      params["weight_hh_l0"], params["bias_ih_l0"],
                      params["bias_hh_l0"])
        h1, c1 = cell(h0, h1, c1, params["weight_ih_l1"],
                      params["weight_hh_l1"], params["bias_ih_l1"],
                      params["bias_hh_l1"])
    return h1 @ params["fc_weight"].T + params["fc_bias"]


if __name__ == "__main__":
    key = jax.random.PRNGKey(0)
    pkey, xkey = jax.random.split(key)

    batch, seq = 4, 8
    x = jax.random.normal(xkey, (batch, seq, INPUT_SIZE), jnp.float32)
    params = init_params(pkey)

    out = nasdaq_predictor_forward(x, params)
    out = jax.block_until_ready(out)

    ref = _reference_forward(x, params)
    assert out.shape == (batch, OUTPUT_SIZE)
    assert jnp.allclose(out, ref, atol=1e-4, rtol=1e-4)

    print("KERNEL_OK")
</pallas_src>

<mosaic_0001>
module attributes {stable_mosaic.version = 11 : i64} {
  func.func @_lstm_fc_kernel(%arg0: memref<8x4x2xf32, #tpu.memory_space<vmem>>, %arg1: memref<2x256xf32, #tpu.memory_space<vmem>>, %arg2: memref<64x256xf32, #tpu.memory_space<vmem>>, %arg3: memref<1x256xf32, #tpu.memory_space<vmem>>, %arg4: memref<128x256xf32, #tpu.memory_space<vmem>>, %arg5: memref<1x256xf32, #tpu.memory_space<vmem>>, %arg6: memref<64x2xf32, #tpu.memory_space<vmem>>, %arg7: memref<1x2xf32, #tpu.memory_space<vmem>>, %arg8: memref<4x2xf32, #tpu.memory_space<vmem>>, %arg9: memref<8x4x256xf32, #tpu.memory_space<vmem>>) attributes {dimension_semantics = [], scalar_prefetch = 0 : i64, scratch_operands = 1 : i64, tpu.core_type = #tpu.core_type<tc>} {
    %c0 = arith.constant 0 : index
    %c0_0 = arith.constant 0 : index
    %c0_1 = arith.constant 0 : index
    %0 = vector.load %arg0[%c0, %c0_0, %c0_1] : memref<8x4x2xf32, #tpu.memory_space<vmem>>, vector<8x4x2xf32>
    %1 = vector.shape_cast %0 : vector<8x4x2xf32> to vector<32x2xf32>
    %c0_2 = arith.constant 0 : index
    %c0_3 = arith.constant 0 : index
    %2 = vector.load %arg1[%c0_2, %c0_3] : memref<2x256xf32, #tpu.memory_space<vmem>>, vector<2x256xf32>
    %cst = arith.constant dense<0.000000e+00> : vector<32x256xf32>
    %3 = tpu.matmul %1, %2, %cst {dimension_numbers = #tpu.dot_dimension_numbers<[1], [0], [0], [1], [0, 0, 1, 1], [], []>} : vector<32x2xf32>, vector<2x256xf32>, vector<32x256xf32> -> vector<32x256xf32>
    %c0_4 = arith.constant 0 : index
    %c0_5 = arith.constant 0 : index
    %4 = vector.load %arg3[%c0_4, %c0_5] : memref<1x256xf32, #tpu.memory_space<vmem>>, vector<1x256xf32>
    %5 = vector.broadcast %4 : vector<1x256xf32> to vector<32x256xf32>
    %6 = arith.addf %3, %5 : vector<32x256xf32>
    %7 = vector.shape_cast %6 : vector<32x256xf32> to vector<8x4x256xf32>
    %c0_6 = arith.constant 0 : index
    %c0_7 = arith.constant 0 : index
    %c0_8 = arith.constant 0 : index
    %8 = vector.load %arg9[%c0_6, %c0_7, %c0_8] : memref<8x4x256xf32, #tpu.memory_space<vmem>>, vector<8x4x256xf32>
    tpu.vector_store %arg9[%c0_6, %c0_7, %c0_8], %7 {strides = array<i32>} : memref<8x4x256xf32, #tpu.memory_space<vmem>>, vector<8x4x256xf32>,
    %c0_9 = arith.constant 0 : index
    %c0_10 = arith.constant 0 : index
    %9 = vector.load %arg5[%c0_9, %c0_10] : memref<1x256xf32, #tpu.memory_space<vmem>>, vector<1x256xf32>
    %10 = vector.shape_cast %9 : vector<1x256xf32> to vector<1x256xf32>
    %11 = vector.broadcast %10 : vector<1x256xf32> to vector<4x256xf32>
    %cst_11 = arith.constant 0.000000e+00 : f32
    %12 = vector.broadcast %cst_11 : f32 to vector<4x64xf32>
    %c0_i32 = arith.constant 0 : i32
    %13 = arith.index_cast %c0_i32 : i32 to index
    %c0_12 = arith.constant 0 : index
    %c0_13 = arith.constant 0 : index
    %14 = vector.load %arg9[%13, %c0_12, %c0_13] : memref<8x4x256xf32, #tpu.memory_space<vmem>>, vector<1x4x256xf32>
    %15 = vector.shape_cast %14 : vector<1x4x256xf32> to vector<4x256xf32>
    %c0_14 = arith.constant 0 : index
    %c0_15 = arith.constant 0 : index
    %16 = vector.load %arg2[%c0_14, %c0_15] : memref<64x256xf32, #tpu.memory_space<vmem>>, vector<64x256xf32>
    %cst_16 = arith.constant dense<0.000000e+00> : vector<4x256xf32>
    %17 = tpu.matmul %12, %16, %cst_16 {dimension_numbers = #tpu.dot_dimension_numbers<[1], [0], [0], [1], [0, 0, 1, 1], [], []>} : vector<4x64xf32>, vector<64x256xf32>, vector<4x256xf32> -> vector<4x256xf32>
    %18 = arith.addf %15, %17 : vector<4x256xf32>
    %19 = vector.extract_strided_slice %18 {offsets = [0, 0], sizes = [4, 128], strides = [1, 1]} : vector<4x256xf32> to vector<4x128xf32>
    %20 = arith.negf %19 : vector<4x128xf32>
    %21 = math.exp %20 : vector<4x128xf32>
    %cst_17 = arith.constant 1.000000e+00 : f32
    %22 = vector.broadcast %cst_17 : f32 to vector<4x128xf32>
    %23 = arith.addf %22, %21 : vector<4x128xf32>
    %24 = arith.divf %22, %23 : vector<4x128xf32>
    %25 = vector.extract_strided_slice %24 {offsets = [0, 0], sizes = [4, 64], strides = [1, 1]} : vector<4x128xf32> to vector<4x64xf32>
    %26 = vector.extract_strided_slice %24 {offsets = [0, 64], sizes = [4, 64], strides = [1, 1]} : vector<4x128xf32> to vector<4x64xf32>
    %27 = vector.extract_strided_slice %18 {offsets = [0, 128], sizes = [4, 64], strides = [1, 1]} : vector<4x256xf32> to vector<4x64xf32>
    %28 = math.tanh %27 : vector<4x64xf32>
    %29 = vector.extract_strided_slice %18 {offsets = [0, 192], sizes = [4, 64], strides = [1, 1]} : vector<4x256xf32> to vector<4x64xf32>
    %30 = arith.negf %29 : vector<4x64xf32>
    %31 = math.exp %30 : vector<4x64xf32>
    %cst_18 = arith.constant 1.000000e+00 : f32
    %32 = vector.broadcast %cst_18 : f32 to vector<4x64xf32>
    %33 = arith.addf %32, %31 : vector<4x64xf32>
    %34 = arith.divf %32, %33 : vector<4x64xf32>
    %35 = arith.mulf %26, %12 : vector<4x64xf32>
    %36 = arith.mulf %25, %28 : vector<4x64xf32>
    %37 = arith.addf %35, %36 : vector<4x64xf32>
    %38 = math.tanh %37 : vector<4x64xf32>
    %39 = arith.mulf %34, %38 : vector<4x64xf32>
    %40 = tpu.concatenate %39, %12 in 1 : vector<4x64xf32>, vector<4x64xf32> -> vector<4x128xf32>
    %c0_19 = arith.constant 0 : index
    %c0_20 = arith.constant 0 : index
    %41 = vector.load %arg4[%c0_19, %c0_20] : memref<128x256xf32, #tpu.memory_space<vmem>>, vector<128x256xf32>
    %cst_21 = arith.constant dense<0.000000e+00> : vector<4x256xf32>
    %42 = tpu.matmul %40, %41, %cst_21 {dimension_numbers = #tpu.dot_dimension_numbers<[1], [0], [0], [1], [0, 0, 1, 1], [], []>} : vector<4x128xf32>, vector<128x256xf32>, vector<4x256xf32> -> vector<4x256xf32>
    %43 = arith.addf %42, %11 : vector<4x256xf32>
    %44 = vector.extract_strided_slice %43 {offsets = [0, 0], sizes = [4, 128], strides = [1, 1]} : vector<4x256xf32> to vector<4x128xf32>
    %45 = arith.negf %44 : vector<4x128xf32>
    %46 = math.exp %45 : vector<4x128xf32>
    %cst_22 = arith.constant 1.000000e+00 : f32
    %47 = vector.broadcast %cst_22 : f32 to vector<4x128xf32>
    %48 = arith.addf %47, %46 : vector<4x128xf32>
    %49 = arith.divf %47, %48 : vector<4x128xf32>
    %50 = vector.extract_strided_slice %49 {offsets = [0, 0], sizes = [4, 64], strides = [1, 1]} : vector<4x128xf32> to vector<4x64xf32>
    %51 = vector.extract_strided_slice %49 {offsets = [0, 64], sizes = [4, 64], strides = [1, 1]} : vector<4x128xf32> to vector<4x64xf32>
    %52 = vector.extract_strided_slice %43 {offsets = [0, 128], sizes = [4, 64], strides = [1, 1]} : vector<4x256xf32> to vector<4x64xf32>
    %53 = math.tanh %52 : vector<4x64xf32>
    %54 = vector.extract_strided_slice %43 {offsets = [0, 192], sizes = [4, 64], strides = [1, 1]} : vector<4x256xf32> to vector<4x64xf32>
    %55 = arith.negf %54 : vector<4x64xf32>
    %56 = math.exp %55 : vector<4x64xf32>
    %cst_23 = arith.constant 1.000000e+00 : f32
    %57 = vector.broadcast %cst_23 : f32 to vector<4x64xf32>
    %58 = arith.addf %57, %56 : vector<4x64xf32>
    %59 = arith.divf %57, %58 : vector<4x64xf32>
    %60 = arith.mulf %51, %12 : vector<4x64xf32>
    %61 = arith.mulf %50, %53 : vector<4x64xf32>
    %62 = arith.addf %60, %61 : vector<4x64xf32>
    %63 = math.tanh %62 : vector<4x64xf32>
    %64 = arith.mulf %59, %63 : vector<4x64xf32>
    %c1_i32 = arith.constant 1 : i32
    %65 = arith.index_cast %c1_i32 : i32 to index
    %c0_24 = arith.constant 0 : index
    %c0_25 = arith.constant 0 : index
    %66 = vector.load %arg9[%65, %c0_24, %c0_25] : memref<8x4x256xf32, #tpu.memory_space<vmem>>, vector<1x4x256xf32>
    %67 = vector.shape_cast %66 : vector<1x4x256xf32> to vector<4x256xf32>
    %c0_26 = arith.constant 0 : index
    %c0_27 = arith.constant 0 : index
    %68 = vector.load %arg2[%c0_26, %c0_27] : memref<64x256xf32, #tpu.memory_space<vmem>>, vector<64x256xf32>
    %cst_28 = arith.constant dense<0.000000e+00> : vector<4x256xf32>
    %69 = tpu.matmul %39, %68, %cst_28 {dimension_numbers = #tpu.dot_dimension_numbers<[1], [0], [0], [1], [0, 0, 1, 1], [], []>} : vector<4x64xf32>, vector<64x256xf32>, vector<4x256xf32> -> vector<4x256xf32>
    %70 = arith.addf %67, %69 : vector<4x256xf32>
    %71 = vector.extract_strided_slice %70 {offsets = [0, 0], sizes = [4, 128], strides = [1, 1]} : vector<4x256xf32> to vector<4x128xf32>
    %72 = arith.negf %71 : vector<4x128xf32>
    %73 = math.exp %72 : vector<4x128xf32>
    %cst_29 = arith.constant 1.000000e+00 : f32
    %74 = vector.broadcast %cst_29 : f32 to vector<4x128xf32>
    %75 = arith.addf %74, %73 : vector<4x128xf32>
    %76 = arith.divf %74, %75 : vector<4x128xf32>
    %77 = vector.extract_strided_slice %76 {offsets = [0, 0], sizes = [4, 64], strides = [1, 1]} : vector<4x128xf32> to vector<4x64xf32>
    %78 = vector.extract_strided_slice %76 {offsets = [0, 64], sizes = [4, 64], strides = [1, 1]} : vector<4x128xf32> to vector<4x64xf32>
    %79 = vector.extract_strided_slice %70 {offsets = [0, 128], sizes = [4, 64], strides = [1, 1]} : vector<4x256xf32> to vector<4x64xf32>
    %80 = math.tanh %79 : vector<4x64xf32>
    %81 = vector.extract_strided_slice %70 {offsets = [0, 192], sizes = [4, 64], strides = [1, 1]} : vector<4x256xf32> to vector<4x64xf32>
    %82 = arith.negf %81 : vector<4x64xf32>
    %83 = math.exp %82 : vector<4x64xf32>
    %cst_30 = arith.constant 1.000000e+00 : f32
    %84 = vector.broadcast %cst_30 : f32 to vector<4x64xf32>
    %85 = arith.addf %84, %83 : vector<4x64xf32>
    %86 = arith.divf %84, %85 : vector<4x64xf32>
    %87 = arith.mulf %78, %37 : vector<4x64xf32>
    %88 = arith.mulf %77, %80 : vector<4x64xf32>
    %89 = arith.addf %87, %88 : vector<4x64xf32>
    %90 = math.tanh %89 : vector<4x64xf32>
    %91 = arith.mulf %86, %90 : vector<4x64xf32>
    %92 = tpu.concatenate %91, %64 in 1 : vector<4x64xf32>, vector<4x64xf32> -> vector<4x128xf32>
    %c0_31 = arith.constant 0 : index
    %c0_32 = arith.constant 0 : index
    %93 = vector.load %arg4[%c0_31, %c0_32] : memref<128x256xf32, #tpu.memory_space<vmem>>, vector<128x256xf32>
    %cst_33 = arith.constant dense<0.000000e+00> : vector<4x256xf32>
    %94 = tpu.matmul %92, %93, %cst_33 {dimension_numbers = #tpu.dot_dimension_numbers<[1], [0], [0], [1], [0, 0, 1, 1], [], []>} : vector<4x128xf32>, vector<128x256xf32>, vector<4x256xf32> -> vector<4x256xf32>
    %95 = arith.addf %94, %11 : vector<4x256xf32>
    %96 = vector.extract_strided_slice %95 {offsets = [0, 0], sizes = [4, 128], strides = [1, 1]} : vector<4x256xf32> to vector<4x128xf32>
    %97 = arith.negf %96 : vector<4x128xf32>
    %98 = math.exp %97 : vector<4x128xf32>
    %cst_34 = arith.constant 1.000000e+00 : f32
    %99 = vector.broadcast %cst_34 : f32 to vector<4x128xf32>
    %100 = arith.addf %99, %98 : vector<4x128xf32>
    %101 = arith.divf %99, %100 : vector<4x128xf32>
    %102 = vector.extract_strided_slice %101 {offsets = [0, 0], sizes = [4, 64], strides = [1, 1]} : vector<4x128xf32> to vector<4x64xf32>
    %103 = vector.extract_strided_slice %101 {offsets = [0, 64], sizes = [4, 64], strides = [1, 1]} : vector<4x128xf32> to vector<4x64xf32>
    %104 = vector.extract_strided_slice %95 {offsets = [0, 128], sizes = [4, 64], strides = [1, 1]} : vector<4x256xf32> to vector<4x64xf32>
    %105 = math.tanh %104 : vector<4x64xf32>
    %106 = vector.extract_strided_slice %95 {offsets = [0, 192], sizes = [4, 64], strides = [1, 1]} : vector<4x256xf32> to vector<4x64xf32>
    %107 = arith.negf %106 : vector<4x64xf32>
    %108 = math.exp %107 : vector<4x64xf32>
    %cst_35 = arith.constant 1.000000e+00 : f32
    %109 = vector.broadcast %cst_35 : f32 to vector<4x64xf32>
    %110 = arith.addf %109, %108 : vector<4x64xf32>
    %111 = arith.divf %109, %110 : vector<4x64xf32>
    %112 = arith.mulf %103, %62 : vector<4x64xf32>
    %113 = arith.mulf %102, %105 : vector<4x64xf32>
    %114 = arith.addf %112, %113 : vector<4x64xf32>
    %115 = math.tanh %114 : vector<4x64xf32>
    %116 = arith.mulf %111, %115 : vector<4x64xf32>
    %c2_i32 = arith.constant 2 : i32
    %117 = arith.index_cast %c2_i32 : i32 to index
    %c0_36 = arith.constant 0 : index
    %c0_37 = arith.constant 0 : index
    %118 = vector.load %arg9[%117, %c0_36, %c0_37] : memref<8x4x256xf32, #tpu.memory_space<vmem>>, vector<1x4x256xf32>
    %119 = vector.shape_cast %118 : vector<1x4x256xf32> to vector<4x256xf32>
    %c0_38 = arith.constant 0 : index
    %c0_39 = arith.constant 0 : index
    %120 = vector.load %arg2[%c0_38, %c0_39] : memref<64x256xf32, #tpu.memory_space<vmem>>, vector<64x256xf32>
    %cst_40 = arith.constant dense<0.000000e+00> : vector<4x256xf32>
    %121 = tpu.matmul %91, %120, %cst_40 {dimension_numbers = #tpu.dot_dimension_numbers<[1], [0], [0], [1], [0, 0, 1, 1], [], []>} : vector<4x64xf32>, vector<64x256xf32>, vector<4x256xf32> -> vector<4x256xf32>
    %122 = arith.addf %119, %121 : vector<4x256xf32>
    %123 = vector.extract_strided_slice %122 {offsets = [0, 0], sizes = [4, 128], strides = [1, 1]} : vector<4x256xf32> to vector<4x128xf32>
    %124 = arith.negf %123 : vector<4x128xf32>
    %125 = math.exp %124 : vector<4x128xf32>
    %cst_41 = arith.constant 1.000000e+00 : f32
    %126 = vector.broadcast %cst_41 : f32 to vector<4x128xf32>
    %127 = arith.addf %126, %125 : vector<4x128xf32>
    %128 = arith.divf %126, %127 : vector<4x128xf32>
    %129 = vector.extract_strided_slice %128 {offsets = [0, 0], sizes = [4, 64], strides = [1, 1]} : vector<4x128xf32> to vector<4x64xf32>
    %130 = vector.extract_strided_slice %128 {offsets = [0, 64], sizes = [4, 64], strides = [1, 1]} : vector<4x128xf32> to vector<4x64xf32>
    %131 = vector.extract_strided_slice %122 {offsets = [0, 128], sizes = [4, 64], strides = [1, 1]} : vector<4x256xf32> to vector<4x64xf32>
    %132 = math.tanh %131 : vector<4x64xf32>
    %133 = vector.extract_strided_slice %122 {offsets = [0, 192], sizes = [4, 64], strides = [1, 1]} : vector<4x256xf32> to vector<4x64xf32>
    %134 = arith.negf %133 : vector<4x64xf32>
    %135 = math.exp %134 : vector<4x64xf32>
    %cst_42 = arith.constant 1.000000e+00 : f32
    %136 = vector.broadcast %cst_42 : f32 to vector<4x64xf32>
    %137 = arith.addf %136, %135 : vector<4x64xf32>
    %138 = arith.divf %136, %137 : vector<4x64xf32>
    %139 = arith.mulf %130, %89 : vector<4x64xf32>
    %140 = arith.mulf %129, %132 : vector<4x64xf32>
    %141 = arith.addf %139, %140 : vector<4x64xf32>
    %142 = math.tanh %141 : vector<4x64xf32>
    %143 = arith.mulf %138, %142 : vector<4x64xf32>
    %144 = tpu.concatenate %143, %116 in 1 : vector<4x64xf32>, vector<4x64xf32> -> vector<4x128xf32>
    %c0_43 = arith.constant 0 : index
    %c0_44 = arith.constant 0 : index
    %145 = vector.load %arg4[%c0_43, %c0_44] : memref<128x256xf32, #tpu.memory_space<vmem>>, vector<128x256xf32>
    %cst_45 = arith.constant dense<0.000000e+00> : vector<4x256xf32>
    %146 = tpu.matmul %144, %145, %cst_45 {dimension_numbers = #tpu.dot_dimension_numbers<[1], [0], [0], [1], [0, 0, 1, 1], [], []>} : vector<4x128xf32>, vector<128x256xf32>, vector<4x256xf32> -> vector<4x256xf32>
    %147 = arith.addf %146, %11 : vector<4x256xf32>
    %148 = vector.extract_strided_slice %147 {offsets = [0, 0], sizes = [4, 128], strides = [1, 1]} : vector<4x256xf32> to vector<4x128xf32>
    %149 = arith.negf %148 : vector<4x128xf32>
    %150 = math.exp %149 : vector<4x128xf32>
    %cst_46 = arith.constant 1.000000e+00 : f32
    %151 = vector.broadcast %cst_46 : f32 to vector<4x128xf32>
    %152 = arith.addf %151, %150 : vector<4x128xf32>
    %153 = arith.divf %151, %152 : vector<4x128xf32>
    %154 = vector.extract_strided_slice %153 {offsets = [0, 0], sizes = [4, 64], strides = [1, 1]} : vector<4x128xf32> to vector<4x64xf32>
    %155 = vector.extract_strided_slice %153 {offsets = [0, 64], sizes = [4, 64], strides = [1, 1]} : vector<4x128xf32> to vector<4x64xf32>
    %156 = vector.extract_strided_slice %147 {offsets = [0, 128], sizes = [4, 64], strides = [1, 1]} : vector<4x256xf32> to vector<4x64xf32>
    %157 = math.tanh %156 : vector<4x64xf32>
    %158 = vector.extract_strided_slice %147 {offsets = [0, 192], sizes = [4, 64], strides = [1, 1]} : vector<4x256xf32> to vector<4x64xf32>
    %159 = arith.negf %158 : vector<4x64xf32>
    %160 = math.exp %159 : vector<4x64xf32>
    %cst_47 = arith.constant 1.000000e+00 : f32
    %161 = vector.broadcast %cst_47 : f32 to vector<4x64xf32>
    %162 = arith.addf %161, %160 : vector<4x64xf32>
    %163 = arith.divf %161, %162 : vector<4x64xf32>
    %164 = arith.mulf %155, %114 : vector<4x64xf32>
    %165 = arith.mulf %154, %157 : vector<4x64xf32>
    %166 = arith.addf %164, %165 : vector<4x64xf32>
    %167 = math.tanh %166 : vector<4x64xf32>
    %168 = arith.mulf %163, %167 : vector<4x64xf32>
    %c3_i32 = arith.constant 3 : i32
    %169 = arith.index_cast %c3_i32 : i32 to index
    %c0_48 = arith.constant 0 : index
    %c0_49 = arith.constant 0 : index
    %170 = vector.load %arg9[%169, %c0_48, %c0_49] : memref<8x4x256xf32, #tpu.memory_space<vmem>>, vector<1x4x256xf32>
    %171 = vector.shape_cast %170 : vector<1x4x256xf32> to vector<4x256xf32>
    %c0_50 = arith.constant 0 : index
    %c0_51 = arith.constant 0 : index
    %172 = vector.load %arg2[%c0_50, %c0_51] : memref<64x256xf32, #tpu.memory_space<vmem>>, vector<64x256xf32>
    %cst_52 = arith.constant dense<0.000000e+00> : vector<4x256xf32>
    %173 = tpu.matmul %143, %172, %cst_52 {dimension_numbers = #tpu.dot_dimension_numbers<[1], [0], [0], [1], [0, 0, 1, 1], [], []>} : vector<4x64xf32>, vector<64x256xf32>, vector<4x256xf32> -> vector<4x256xf32>
    %174 = arith.addf %171, %173 : vector<4x256xf32>
    %175 = vector.extract_strided_slice %174 {offsets = [0, 0], sizes = [4, 128], strides = [1, 1]} : vector<4x256xf32> to vector<4x128xf32>
    %176 = arith.negf %175 : vector<4x128xf32>
    %177 = math.exp %176 : vector<4x128xf32>
    %cst_53 = arith.constant 1.000000e+00 : f32
    %178 = vector.broadcast %cst_53 : f32 to vector<4x128xf32>
    %179 = arith.addf %178, %177 : vector<4x128xf32>
    %180 = arith.divf %178, %179 : vector<4x128xf32>
    %181 = vector.extract_strided_slice %180 {offsets = [0, 0], sizes = [4, 64], strides = [1, 1]} : vector<4x128xf32> to vector<4x64xf32>
    %182 = vector.extract_strided_slice %180 {offsets = [0, 64], sizes = [4, 64], strides = [1, 1]} : vector<4x128xf32> to vector<4x64xf32>
    %183 = vector.extract_strided_slice %174 {offsets = [0, 128], sizes = [4, 64], strides = [1, 1]} : vector<4x256xf32> to vector<4x64xf32>
    %184 = math.tanh %183 : vector<4x64xf32>
    %185 = vector.extract_strided_slice %174 {offsets = [0, 192], sizes = [4, 64], strides = [1, 1]} : vector<4x256xf32> to vector<4x64xf32>
    %186 = arith.negf %185 : vector<4x64xf32>
    %187 = math.exp %186 : vector<4x64xf32>
    %cst_54 = arith.constant 1.000000e+00 : f32
    %188 = vector.broadcast %cst_54 : f32 to vector<4x64xf32>
    %189 = arith.addf %188, %187 : vector<4x64xf32>
    %190 = arith.divf %188, %189 : vector<4x64xf32>
    %191 = arith.mulf %182, %141 : vector<4x64xf32>
    %192 = arith.mulf %181, %184 : vector<4x64xf32>
    %193 = arith.addf %191, %192 : vector<4x64xf32>
    %194 = math.tanh %193 : vector<4x64xf32>
    %195 = arith.mulf %190, %194 : vector<4x64xf32>
    %196 = tpu.concatenate %195, %168 in 1 : vector<4x64xf32>, vector<4x64xf32> -> vector<4x128xf32>
    %c0_55 = arith.constant 0 : index
    %c0_56 = arith.constant 0 : index
    %197 = vector.load %arg4[%c0_55, %c0_56] : memref<128x256xf32, #tpu.memory_space<vmem>>, vector<128x256xf32>
    %cst_57 = arith.constant dense<0.000000e+00> : vector<4x256xf32>
    %198 = tpu.matmul %196, %197, %cst_57 {dimension_numbers = #tpu.dot_dimension_numbers<[1], [0], [0], [1], [0, 0, 1, 1], [], []>} : vector<4x128xf32>, vector<128x256xf32>, vector<4x256xf32> -> vector<4x256xf32>
    %199 = arith.addf %198, %11 : vector<4x256xf32>
    %200 = vector.extract_strided_slice %199 {offsets = [0, 0], sizes = [4, 128], strides = [1, 1]} : vector<4x256xf32> to vector<4x128xf32>
    %201 = arith.negf %200 : vector<4x128xf32>
    %202 = math.exp %201 : vector<4x128xf32>
    %cst_58 = arith.constant 1.000000e+00 : f32
    %203 = vector.broadcast %cst_58 : f32 to vector<4x128xf32>
    %204 = arith.addf %203, %202 : vector<4x128xf32>
    %205 = arith.divf %203, %204 : vector<4x128xf32>
    %206 = vector.extract_strided_slice %205 {offsets = [0, 0], sizes = [4, 64], strides = [1, 1]} : vector<4x128xf32> to vector<4x64xf32>
    %207 = vector.extract_strided_slice %205 {offsets = [0, 64], sizes = [4, 64], strides = [1, 1]} : vector<4x128xf32> to vector<4x64xf32>
    %208 = vector.extract_strided_slice %199 {offsets = [0, 128], sizes = [4, 64], strides = [1, 1]} : vector<4x256xf32> to vector<4x64xf32>
    %209 = math.tanh %208 : vector<4x64xf32>
    %210 = vector.extract_strided_slice %199 {offsets = [0, 192], sizes = [4, 64], strides = [1, 1]} : vector<4x256xf32> to vector<4x64xf32>
    %211 = arith.negf %210 : vector<4x64xf32>
    %212 = math.exp %211 : vector<4x64xf32>
    %cst_59 = arith.constant 1.000000e+00 : f32
    %213 = vector.broadcast %cst_59 : f32 to vector<4x64xf32>
    %214 = arith.addf %213, %212 : vector<4x64xf32>
    %215 = arith.divf %213, %214 : vector<4x64xf32>
    %216 = arith.mulf %207, %166 : vector<4x64xf32>
    %217 = arith.mulf %206, %209 : vector<4x64xf32>
    %218 = arith.addf %216, %217 : vector<4x64xf32>
    %219 = math.tanh %218 : vector<4x64xf32>
    %220 = arith.mulf %215, %219 : vector<4x64xf32>
    %c4_i32 = arith.constant 4 : i32
    %221 = arith.index_cast %c4_i32 : i32 to index
    %c0_60 = arith.constant 0 : index
    %c0_61 = arith.constant 0 : index
    %222 = vector.load %arg9[%221, %c0_60, %c0_61] : memref<8x4x256xf32, #tpu.memory_space<vmem>>, vector<1x4x256xf32>
    %223 = vector.shape_cast %222 : vector<1x4x256xf32> to vector<4x256xf32>
    %c0_62 = arith.constant 0 : index
    %c0_63 = arith.constant 0 : index
    %224 = vector.load %arg2[%c0_62, %c0_63] : memref<64x256xf32, #tpu.memory_space<vmem>>, vector<64x256xf32>
    %cst_64 = arith.constant dense<0.000000e+00> : vector<4x256xf32>
    %225 = tpu.matmul %195, %224, %cst_64 {dimension_numbers = #tpu.dot_dimension_numbers<[1], [0], [0], [1], [0, 0, 1, 1], [], []>} : vector<4x64xf32>, vector<64x256xf32>, vector<4x256xf32> -> vector<4x256xf32>
    %226 = arith.addf %223, %225 : vector<4x256xf32>
    %227 = vector.extract_strided_slice %226 {offsets = [0, 0], sizes = [4, 128], strides = [1, 1]} : vector<4x256xf32> to vector<4x128xf32>
    %228 = arith.negf %227 : vector<4x128xf32>
    %229 = math.exp %228 : vector<4x128xf32>
    %cst_65 = arith.constant 1.000000e+00 : f32
    %230 = vector.broadcast %cst_65 : f32 to vector<4x128xf32>
    %231 = arith.addf %230, %229 : vector<4x128xf32>
    %232 = arith.divf %230, %231 : vector<4x128xf32>
    %233 = vector.extract_strided_slice %232 {offsets = [0, 0], sizes = [4, 64], strides = [1, 1]} : vector<4x128xf32> to vector<4x64xf32>
    %234 = vector.extract_strided_slice %232 {offsets = [0, 64], sizes = [4, 64], strides = [1, 1]} : vector<4x128xf32> to vector<4x64xf32>
    %235 = vector.extract_strided_slice %226 {offsets = [0, 128], sizes = [4, 64], strides = [1, 1]} : vector<4x256xf32> to vector<4x64xf32>
    %236 = math.tanh %235 : vector<4x64xf32>
    %237 = vector.extract_strided_slice %226 {offsets = [0, 192], sizes = [4, 64], strides = [1, 1]} : vector<4x256xf32> to vector<4x64xf32>
    %238 = arith.negf %237 : vector<4x64xf32>
    %239 = math.exp %238 : vector<4x64xf32>
    %cst_66 = arith.constant 1.000000e+00 : f32
    %240 = vector.broadcast %cst_66 : f32 to vector<4x64xf32>
    %241 = arith.addf %240, %239 : vector<4x64xf32>
    %242 = arith.divf %240, %241 : vector<4x64xf32>
    %243 = arith.mulf %234, %193 : vector<4x64xf32>
    %244 = arith.mulf %233, %236 : vector<4x64xf32>
    %245 = arith.addf %243, %244 : vector<4x64xf32>
    %246 = math.tanh %245 : vector<4x64xf32>
    %247 = arith.mulf %242, %246 : vector<4x64xf32>
    %248 = tpu.concatenate %247, %220 in 1 : vector<4x64xf32>, vector<4x64xf32> -> vector<4x128xf32>
    %c0_67 = arith.constant 0 : index
    %c0_68 = arith.constant 0 : index
    %249 = vector.load %arg4[%c0_67, %c0_68] : memref<128x256xf32, #tpu.memory_space<vmem>>, vector<128x256xf32>
    %cst_69 = arith.constant dense<0.000000e+00> : vector<4x256xf32>
    %250 = tpu.matmul %248, %249, %cst_69 {dimension_numbers = #tpu.dot_dimension_numbers<[1], [0], [0], [1], [0, 0, 1, 1], [], []>} : vector<4x128xf32>, vector<128x256xf32>, vector<4x256xf32> -> vector<4x256xf32>
    %251 = arith.addf %250, %11 : vector<4x256xf32>
    %252 = vector.extract_strided_slice %251 {offsets = [0, 0], sizes = [4, 128], strides = [1, 1]} : vector<4x256xf32> to vector<4x128xf32>
    %253 = arith.negf %252 : vector<4x128xf32>
    %254 = math.exp %253 : vector<4x128xf32>
    %cst_70 = arith.constant 1.000000e+00 : f32
    %255 = vector.broadcast %cst_70 : f32 to vector<4x128xf32>
    %256 = arith.addf %255, %254 : vector<4x128xf32>
    %257 = arith.divf %255, %256 : vector<4x128xf32>
    %258 = vector.extract_strided_slice %257 {offsets = [0, 0], sizes = [4, 64], strides = [1, 1]} : vector<4x128xf32> to vector<4x64xf32>
    %259 = vector.extract_strided_slice %257 {offsets = [0, 64], sizes = [4, 64], strides = [1, 1]} : vector<4x128xf32> to vector<4x64xf32>
    %260 = vector.extract_strided_slice %251 {offsets = [0, 128], sizes = [4, 64], strides = [1, 1]} : vector<4x256xf32> to vector<4x64xf32>
    %261 = math.tanh %260 : vector<4x64xf32>
    %262 = vector.extract_strided_slice %251 {offsets = [0, 192], sizes = [4, 64], strides = [1, 1]} : vector<4x256xf32> to vector<4x64xf32>
    %263 = arith.negf %262 : vector<4x64xf32>
    %264 = math.exp %263 : vector<4x64xf32>
    %cst_71 = arith.constant 1.000000e+00 : f32
    %265 = vector.broadcast %cst_71 : f32 to vector<4x64xf32>
    %266 = arith.addf %265, %264 : vector<4x64xf32>
    %267 = arith.divf %265, %266 : vector<4x64xf32>
    %268 = arith.mulf %259, %218 : vector<4x64xf32>
    %269 = arith.mulf %258, %261 : vector<4x64xf32>
    %270 = arith.addf %268, %269 : vector<4x64xf32>
    %271 = math.tanh %270 : vector<4x64xf32>
    %272 = arith.mulf %267, %271 : vector<4x64xf32>
    %c5_i32 = arith.constant 5 : i32
    %273 = arith.index_cast %c5_i32 : i32 to index
    %c0_72 = arith.constant 0 : index
    %c0_73 = arith.constant 0 : index
    %274 = vector.load %arg9[%273, %c0_72, %c0_73] : memref<8x4x256xf32, #tpu.memory_space<vmem>>, vector<1x4x256xf32>
    %275 = vector.shape_cast %274 : vector<1x4x256xf32> to vector<4x256xf32>
    %c0_74 = arith.constant 0 : index
    %c0_75 = arith.constant 0 : index
    %276 = vector.load %arg2[%c0_74, %c0_75] : memref<64x256xf32, #tpu.memory_space<vmem>>, vector<64x256xf32>
    %cst_76 = arith.constant dense<0.000000e+00> : vector<4x256xf32>
    %277 = tpu.matmul %247, %276, %cst_76 {dimension_numbers = #tpu.dot_dimension_numbers<[1], [0], [0], [1], [0, 0, 1, 1], [], []>} : vector<4x64xf32>, vector<64x256xf32>, vector<4x256xf32> -> vector<4x256xf32>
    %278 = arith.addf %275, %277 : vector<4x256xf32>
    %279 = vector.extract_strided_slice %278 {offsets = [0, 0], sizes = [4, 128], strides = [1, 1]} : vector<4x256xf32> to vector<4x128xf32>
    %280 = arith.negf %279 : vector<4x128xf32>
    %281 = math.exp %280 : vector<4x128xf32>
    %cst_77 = arith.constant 1.000000e+00 : f32
    %282 = vector.broadcast %cst_77 : f32 to vector<4x128xf32>
    %283 = arith.addf %282, %281 : vector<4x128xf32>
    %284 = arith.divf %282, %283 : vector<4x128xf32>
    %285 = vector.extract_strided_slice %284 {offsets = [0, 0], sizes = [4, 64], strides = [1, 1]} : vector<4x128xf32> to vector<4x64xf32>
    %286 = vector.extract_strided_slice %284 {offsets = [0, 64], sizes = [4, 64], strides = [1, 1]} : vector<4x128xf32> to vector<4x64xf32>
    %287 = vector.extract_strided_slice %278 {offsets = [0, 128], sizes = [4, 64], strides = [1, 1]} : vector<4x256xf32> to vector<4x64xf32>
    %288 = math.tanh %287 : vector<4x64xf32>
    %289 = vector.extract_strided_slice %278 {offsets = [0, 192], sizes = [4, 64], strides = [1, 1]} : vector<4x256xf32> to vector<4x64xf32>
    %290 = arith.negf %289 : vector<4x64xf32>
    %291 = math.exp %290 : vector<4x64xf32>
    %cst_78 = arith.constant 1.000000e+00 : f32
    %292 = vector.broadcast %cst_78 : f32 to vector<4x64xf32>
    %293 = arith.addf %292, %291 : vector<4x64xf32>
    %294 = arith.divf %292, %293 : vector<4x64xf32>
    %295 = arith.mulf %286, %245 : vector<4x64xf32>
    %296 = arith.mulf %285, %288 : vector<4x64xf32>
    %297 = arith.addf %295, %296 : vector<4x64xf32>
    %298 = math.tanh %297 : vector<4x64xf32>
    %299 = arith.mulf %294, %298 : vector<4x64xf32>
    %300 = tpu.concatenate %299, %272 in 1 : vector<4x64xf32>, vector<4x64xf32> -> vector<4x128xf32>
    %c0_79 = arith.constant 0 : index
    %c0_80 = arith.constant 0 : index
    %301 = vector.load %arg4[%c0_79, %c0_80] : memref<128x256xf32, #tpu.memory_space<vmem>>, vector<128x256xf32>
    %cst_81 = arith.constant dense<0.000000e+00> : vector<4x256xf32>
    %302 = tpu.matmul %300, %301, %cst_81 {dimension_numbers = #tpu.dot_dimension_numbers<[1], [0], [0], [1], [0, 0, 1, 1], [], []>} : vector<4x128xf32>, vector<128x256xf32>, vector<4x256xf32> -> vector<4x256xf32>
    %303 = arith.addf %302, %11 : vector<4x256xf32>
    %304 = vector.extract_strided_slice %303 {offsets = [0, 0], sizes = [4, 128], strides = [1, 1]} : vector<4x256xf32> to vector<4x128xf32>
    %305 = arith.negf %304 : vector<4x128xf32>
    %306 = math.exp %305 : vector<4x128xf32>
    %cst_82 = arith.constant 1.000000e+00 : f32
    %307 = vector.broadcast %cst_82 : f32 to vector<4x128xf32>
    %308 = arith.addf %307, %306 : vector<4x128xf32>
    %309 = arith.divf %307, %308 : vector<4x128xf32>
    %310 = vector.extract_strided_slice %309 {offsets = [0, 0], sizes = [4, 64], strides = [1, 1]} : vector<4x128xf32> to vector<4x64xf32>
    %311 = vector.extract_strided_slice %309 {offsets = [0, 64], sizes = [4, 64], strides = [1, 1]} : vector<4x128xf32> to vector<4x64xf32>
    %312 = vector.extract_strided_slice %303 {offsets = [0, 128], sizes = [4, 64], strides = [1, 1]} : vector<4x256xf32> to vector<4x64xf32>
    %313 = math.tanh %312 : vector<4x64xf32>
    %314 = vector.extract_strided_slice %303 {offsets = [0, 192], sizes = [4, 64], strides = [1, 1]} : vector<4x256xf32> to vector<4x64xf32>
    %315 = arith.negf %314 : vector<4x64xf32>
    %316 = math.exp %315 : vector<4x64xf32>
    %cst_83 = arith.constant 1.000000e+00 : f32
    %317 = vector.broadcast %cst_83 : f32 to vector<4x64xf32>
    %318 = arith.addf %317, %316 : vector<4x64xf32>
    %319 = arith.divf %317, %318 : vector<4x64xf32>
    %320 = arith.mulf %311, %270 : vector<4x64xf32>
    %321 = arith.mulf %310, %313 : vector<4x64xf32>
    %322 = arith.addf %320, %321 : vector<4x64xf32>
    %323 = math.tanh %322 : vector<4x64xf32>
    %324 = arith.mulf %319, %323 : vector<4x64xf32>
    %c6_i32 = arith.constant 6 : i32
    %325 = arith.index_cast %c6_i32 : i32 to index
    %c0_84 = arith.constant 0 : index
    %c0_85 = arith.constant 0 : index
    %326 = vector.load %arg9[%325, %c0_84, %c0_85] : memref<8x4x256xf32, #tpu.memory_space<vmem>>, vector<1x4x256xf32>
    %327 = vector.shape_cast %326 : vector<1x4x256xf32> to vector<4x256xf32>
    %c0_86 = arith.constant 0 : index
    %c0_87 = arith.constant 0 : index
    %328 = vector.load %arg2[%c0_86, %c0_87] : memref<64x256xf32, #tpu.memory_space<vmem>>, vector<64x256xf32>
    %cst_88 = arith.constant dense<0.000000e+00> : vector<4x256xf32>
    %329 = tpu.matmul %299, %328, %cst_88 {dimension_numbers = #tpu.dot_dimension_numbers<[1], [0], [0], [1], [0, 0, 1, 1], [], []>} : vector<4x64xf32>, vector<64x256xf32>, vector<4x256xf32> -> vector<4x256xf32>
    %330 = arith.addf %327, %329 : vector<4x256xf32>
    %331 = vector.extract_strided_slice %330 {offsets = [0, 0], sizes = [4, 128], strides = [1, 1]} : vector<4x256xf32> to vector<4x128xf32>
    %332 = arith.negf %331 : vector<4x128xf32>
    %333 = math.exp %332 : vector<4x128xf32>
    %cst_89 = arith.constant 1.000000e+00 : f32
    %334 = vector.broadcast %cst_89 : f32 to vector<4x128xf32>
    %335 = arith.addf %334, %333 : vector<4x128xf32>
    %336 = arith.divf %334, %335 : vector<4x128xf32>
    %337 = vector.extract_strided_slice %336 {offsets = [0, 0], sizes = [4, 64], strides = [1, 1]} : vector<4x128xf32> to vector<4x64xf32>
    %338 = vector.extract_strided_slice %336 {offsets = [0, 64], sizes = [4, 64], strides = [1, 1]} : vector<4x128xf32> to vector<4x64xf32>
    %339 = vector.extract_strided_slice %330 {offsets = [0, 128], sizes = [4, 64], strides = [1, 1]} : vector<4x256xf32> to vector<4x64xf32>
    %340 = math.tanh %339 : vector<4x64xf32>
    %341 = vector.extract_strided_slice %330 {offsets = [0, 192], sizes = [4, 64], strides = [1, 1]} : vector<4x256xf32> to vector<4x64xf32>
    %342 = arith.negf %341 : vector<4x64xf32>
    %343 = math.exp %342 : vector<4x64xf32>
    %cst_90 = arith.constant 1.000000e+00 : f32
    %344 = vector.broadcast %cst_90 : f32 to vector<4x64xf32>
    %345 = arith.addf %344, %343 : vector<4x64xf32>
    %346 = arith.divf %344, %345 : vector<4x64xf32>
    %347 = arith.mulf %338, %297 : vector<4x64xf32>
    %348 = arith.mulf %337, %340 : vector<4x64xf32>
    %349 = arith.addf %347, %348 : vector<4x64xf32>
    %350 = math.tanh %349 : vector<4x64xf32>
    %351 = arith.mulf %346, %350 : vector<4x64xf32>
    %352 = tpu.concatenate %351, %324 in 1 : vector<4x64xf32>, vector<4x64xf32> -> vector<4x128xf32>
    %c0_91 = arith.constant 0 : index
    %c0_92 = arith.constant 0 : index
    %353 = vector.load %arg4[%c0_91, %c0_92] : memref<128x256xf32, #tpu.memory_space<vmem>>, vector<128x256xf32>
    %cst_93 = arith.constant dense<0.000000e+00> : vector<4x256xf32>
    %354 = tpu.matmul %352, %353, %cst_93 {dimension_numbers = #tpu.dot_dimension_numbers<[1], [0], [0], [1], [0, 0, 1, 1], [], []>} : vector<4x128xf32>, vector<128x256xf32>, vector<4x256xf32> -> vector<4x256xf32>
    %355 = arith.addf %354, %11 : vector<4x256xf32>
    %356 = vector.extract_strided_slice %355 {offsets = [0, 0], sizes = [4, 128], strides = [1, 1]} : vector<4x256xf32> to vector<4x128xf32>
    %357 = arith.negf %356 : vector<4x128xf32>
    %358 = math.exp %357 : vector<4x128xf32>
    %cst_94 = arith.constant 1.000000e+00 : f32
    %359 = vector.broadcast %cst_94 : f32 to vector<4x128xf32>
    %360 = arith.addf %359, %358 : vector<4x128xf32>
    %361 = arith.divf %359, %360 : vector<4x128xf32>
    %362 = vector.extract_strided_slice %361 {offsets = [0, 0], sizes = [4, 64], strides = [1, 1]} : vector<4x128xf32> to vector<4x64xf32>
    %363 = vector.extract_strided_slice %361 {offsets = [0, 64], sizes = [4, 64], strides = [1, 1]} : vector<4x128xf32> to vector<4x64xf32>
    %364 = vector.extract_strided_slice %355 {offsets = [0, 128], sizes = [4, 64], strides = [1, 1]} : vector<4x256xf32> to vector<4x64xf32>
    %365 = math.tanh %364 : vector<4x64xf32>
    %366 = vector.extract_strided_slice %355 {offsets = [0, 192], sizes = [4, 64], strides = [1, 1]} : vector<4x256xf32> to vector<4x64xf32>
    %367 = arith.negf %366 : vector<4x64xf32>
    %368 = math.exp %367 : vector<4x64xf32>
    %cst_95 = arith.constant 1.000000e+00 : f32
    %369 = vector.broadcast %cst_95 : f32 to vector<4x64xf32>
    %370 = arith.addf %369, %368 : vector<4x64xf32>
    %371 = arith.divf %369, %370 : vector<4x64xf32>
    %372 = arith.mulf %363, %322 : vector<4x64xf32>
    %373 = arith.mulf %362, %365 : vector<4x64xf32>
    %374 = arith.addf %372, %373 : vector<4x64xf32>
    %375 = math.tanh %374 : vector<4x64xf32>
    %376 = arith.mulf %371, %375 : vector<4x64xf32>
    %c7_i32 = arith.constant 7 : i32
    %377 = arith.index_cast %c7_i32 : i32 to index
    %c0_96 = arith.constant 0 : index
    %c0_97 = arith.constant 0 : index
    %378 = vector.load %arg9[%377, %c0_96, %c0_97] : memref<8x4x256xf32, #tpu.memory_space<vmem>>, vector<1x4x256xf32>
    %379 = vector.shape_cast %378 : vector<1x4x256xf32> to vector<4x256xf32>
    %c0_98 = arith.constant 0 : index
    %c0_99 = arith.constant 0 : index
    %380 = vector.load %arg2[%c0_98, %c0_99] : memref<64x256xf32, #tpu.memory_space<vmem>>, vector<64x256xf32>
    %cst_100 = arith.constant dense<0.000000e+00> : vector<4x256xf32>
    %381 = tpu.matmul %351, %380, %cst_100 {dimension_numbers = #tpu.dot_dimension_numbers<[1], [0], [0], [1], [0, 0, 1, 1], [], []>} : vector<4x64xf32>, vector<64x256xf32>, vector<4x256xf32> -> vector<4x256xf32>
    %382 = arith.addf %379, %381 : vector<4x256xf32>
    %383 = vector.extract_strided_slice %382 {offsets = [0, 0], sizes = [4, 128], strides = [1, 1]} : vector<4x256xf32> to vector<4x128xf32>
    %384 = arith.negf %383 : vector<4x128xf32>
    %385 = math.exp %384 : vector<4x128xf32>
    %cst_101 = arith.constant 1.000000e+00 : f32
    %386 = vector.broadcast %cst_101 : f32 to vector<4x128xf32>
    %387 = arith.addf %386, %385 : vector<4x128xf32>
    %388 = arith.divf %386, %387 : vector<4x128xf32>
    %389 = vector.extract_strided_slice %388 {offsets = [0, 0], sizes = [4, 64], strides = [1, 1]} : vector<4x128xf32> to vector<4x64xf32>
    %390 = vector.extract_strided_slice %388 {offsets = [0, 64], sizes = [4, 64], strides = [1, 1]} : vector<4x128xf32> to vector<4x64xf32>
    %391 = vector.extract_strided_slice %382 {offsets = [0, 128], sizes = [4, 64], strides = [1, 1]} : vector<4x256xf32> to vector<4x64xf32>
    %392 = math.tanh %391 : vector<4x64xf32>
    %393 = vector.extract_strided_slice %382 {offsets = [0, 192], sizes = [4, 64], strides = [1, 1]} : vector<4x256xf32> to vector<4x64xf32>
    %394 = arith.negf %393 : vector<4x64xf32>
    %395 = math.exp %394 : vector<4x64xf32>
    %cst_102 = arith.constant 1.000000e+00 : f32
    %396 = vector.broadcast %cst_102 : f32 to vector<4x64xf32>
    %397 = arith.addf %396, %395 : vector<4x64xf32>
    %398 = arith.divf %396, %397 : vector<4x64xf32>
    %399 = arith.mulf %390, %349 : vector<4x64xf32>
    %400 = arith.mulf %389, %392 : vector<4x64xf32>
    %401 = arith.addf %399, %400 : vector<4x64xf32>
    %402 = math.tanh %401 : vector<4x64xf32>
    %403 = arith.mulf %398, %402 : vector<4x64xf32>
    %404 = tpu.concatenate %403, %376 in 1 : vector<4x64xf32>, vector<4x64xf32> -> vector<4x128xf32>
    %c0_103 = arith.constant 0 : index
    %c0_104 = arith.constant 0 : index
    %405 = vector.load %arg4[%c0_103, %c0_104] : memref<128x256xf32, #tpu.memory_space<vmem>>, vector<128x256xf32>
    %cst_105 = arith.constant dense<0.000000e+00> : vector<4x256xf32>
    %406 = tpu.matmul %404, %405, %cst_105 {dimension_numbers = #tpu.dot_dimension_numbers<[1], [0], [0], [1], [0, 0, 1, 1], [], []>} : vector<4x128xf32>, vector<128x256xf32>, vector<4x256xf32> -> vector<4x256xf32>
    %407 = arith.addf %406, %11 : vector<4x256xf32>
    %408 = vector.extract_strided_slice %407 {offsets = [0, 0], sizes = [4, 128], strides = [1, 1]} : vector<4x256xf32> to vector<4x128xf32>
    %409 = arith.negf %408 : vector<4x128xf32>
    %410 = math.exp %409 : vector<4x128xf32>
    %cst_106 = arith.constant 1.000000e+00 : f32
    %411 = vector.broadcast %cst_106 : f32 to vector<4x128xf32>
    %412 = arith.addf %411, %410 : vector<4x128xf32>
    %413 = arith.divf %411, %412 : vector<4x128xf32>
    %414 = vector.extract_strided_slice %413 {offsets = [0, 0], sizes = [4, 64], strides = [1, 1]} : vector<4x128xf32> to vector<4x64xf32>
    %415 = vector.extract_strided_slice %413 {offsets = [0, 64], sizes = [4, 64], strides = [1, 1]} : vector<4x128xf32> to vector<4x64xf32>
    %416 = vector.extract_strided_slice %407 {offsets = [0, 128], sizes = [4, 64], strides = [1, 1]} : vector<4x256xf32> to vector<4x64xf32>
    %417 = math.tanh %416 : vector<4x64xf32>
    %418 = vector.extract_strided_slice %407 {offsets = [0, 192], sizes = [4, 64], strides = [1, 1]} : vector<4x256xf32> to vector<4x64xf32>
    %419 = arith.negf %418 : vector<4x64xf32>
    %420 = math.exp %419 : vector<4x64xf32>
    %cst_107 = arith.constant 1.000000e+00 : f32
    %421 = vector.broadcast %cst_107 : f32 to vector<4x64xf32>
    %422 = arith.addf %421, %420 : vector<4x64xf32>
    %423 = arith.divf %421, %422 : vector<4x64xf32>
    %424 = arith.mulf %415, %374 : vector<4x64xf32>
    %425 = arith.mulf %414, %417 : vector<4x64xf32>
    %426 = arith.addf %424, %425 : vector<4x64xf32>
    %427 = math.tanh %426 : vector<4x64xf32>
    %428 = arith.mulf %423, %427 : vector<4x64xf32>
    %c8_i32 = arith.constant 8 : i32
    %c0_108 = arith.constant 0 : index
    %c0_109 = arith.constant 0 : index
    %429 = vector.load %arg6[%c0_108, %c0_109] : memref<64x2xf32, #tpu.memory_space<vmem>>, vector<64x2xf32>
    %cst_110 = arith.constant dense<0.000000e+00> : vector<4x2xf32>
    %430 = tpu.matmul %428, %429, %cst_110 {dimension_numbers = #tpu.dot_dimension_numbers<[1], [0], [0], [1], [0, 0, 1, 1], [], []>} : vector<4x64xf32>, vector<64x2xf32>, vector<4x2xf32> -> vector<4x2xf32>
    %c0_111 = arith.constant 0 : index
    %c0_112 = arith.constant 0 : index
    %431 = vector.load %arg7[%c0_111, %c0_112] : memref<1x2xf32, #tpu.memory_space<vmem>>, vector<1x2xf32>
    %432 = vector.broadcast %431 : vector<1x2xf32> to vector<4x2xf32>
    %433 = arith.addf %430, %432 : vector<4x2xf32>
    %c0_113 = arith.constant 0 : index
    %c0_114 = arith.constant 0 : index
    %434 = vector.load %arg8[%c0_113, %c0_114] : memref<4x2xf32, #tpu.memory_space<vmem>>, vector<4x2xf32>
    tpu.vector_store %arg8[%c0_113, %c0_114], %433 {strides = array<i32>} : memref<4x2xf32, #tpu.memory_space<vmem>>, vector<4x2xf32>,
    return
  }
}

</mosaic_0001>

<llo_original>
// kernel: nasdaq_predictor_forward.1
$region0: #{nasdaq_predictor_forward.1}
  #allocation0 [shape = 'u32[]', space=smem, size = 0x4, offset = 0x4, fixed_abs, tag = 'smem constant byte address 0x4 - core index']
  #allocation1 [shape = 'u32[144,128]{1,0:T(1,128)}', space=vmem, size = 0x12000, scoped, tag = 'internal scratch']
  #allocation2 [shape = 'f32[8,4,256]{2,1,0:T(4,128)}', space=vmem, size = 0x8000, scoped, tag = 'scratch operand']
  %s0 = inlined_call_operand.vmem [shape: f32[8,4,2], index: 0, kind: input, shape index: {}]
  %s1 = inlined_call_operand.vmem [shape: f32[2,256], index: 1, kind: input, shape index: {}]
  %s2 = inlined_call_operand.vmem [shape: f32[64,256], index: 2, kind: input, shape index: {}]
  %s3 = inlined_call_operand.vmem [shape: f32[1,256], index: 3, kind: input, shape index: {}]
  %s4 = inlined_call_operand.vmem [shape: f32[128,256], index: 4, kind: input, shape index: {}]
  %s5 = inlined_call_operand.vmem [shape: f32[1,256], index: 5, kind: input, shape index: {}]
  %s6 = inlined_call_operand.vmem [shape: f32[64,2], index: 6, kind: input, shape index: {}]
  %s7 = inlined_call_operand.vmem [shape: f32[1,2], index: 7, kind: input, shape index: {}]
  %s8 = inlined_call_operand.vmem [shape: f32[4,2], index: 8, kind: output, shape index: {}]
  %s9 = sld [smem:[#allocation0]]
  $region42: #{nasdaq_predictor_forward.1} parent=0
    _
  %s11 = ssub.s32 1, %s9
  %s12 = scalar_select 0, %s11, %s9
  // Predicated region
  $region2: #{nasdaq_predictor_forward.1} parent=0 // pred_check
    _
  $region3: #{nasdaq_predictor_forward.1} parent=0 // pred_check_branch
    %14 = sbr.rel (0) target = $region5
  $region4: #{nasdaq_predictor_forward.1} parent=0 // pred_region
    _
  $region5: #{nasdaq_predictor_forward.1} parent=0 // pred_fallthru
    _
  // Predicated region
  $region6: #{nasdaq_predictor_forward.1} parent=0 // pred_check
    _
  $region7: #{nasdaq_predictor_forward.1} parent=0 // pred_check_branch
    %16 = sbr.rel (0) target = $region9
  $region8: #{nasdaq_predictor_forward.1} parent=0 // pred_region
    _
  $region9: #{nasdaq_predictor_forward.1} parent=0 // pred_fallthru
    _
  // Predicated region
  $region10: #{nasdaq_predictor_forward.1} parent=0 // pred_check
    _
  $region11: #{nasdaq_predictor_forward.1} parent=0 // pred_check_branch
    %18 = sbr.rel (0) target = $region13
  $region12: #{nasdaq_predictor_forward.1} parent=0 // pred_region
    _
  $region13: #{nasdaq_predictor_forward.1} parent=0 // pred_fallthru
    _
  // Predicated region
  $region14: #{nasdaq_predictor_forward.1} parent=0 // pred_check
    _
  $region15: #{nasdaq_predictor_forward.1} parent=0 // pred_check_branch
    %20 = sbr.rel (0) target = $region17
  $region16: #{nasdaq_predictor_forward.1} parent=0 // pred_region
    _
  $region17: #{nasdaq_predictor_forward.1} parent=0 // pred_fallthru
    _
  // Predicated region
  $region18: #{nasdaq_predictor_forward.1} parent=0 // pred_check
    _
  $region19: #{nasdaq_predictor_forward.1} parent=0 // pred_check_branch
    %22 = sbr.rel (0) target = $region21
  $region20: #{nasdaq_predictor_forward.1} parent=0 // pred_region
    _
  $region21: #{nasdaq_predictor_forward.1} parent=0 // pred_fallthru
    _
  // Predicated region
  $region22: #{nasdaq_predictor_forward.1} parent=0 // pred_check
    _
  $region23: #{nasdaq_predictor_forward.1} parent=0 // pred_check_branch
    %24 = sbr.rel (0) target = $region25
  $region24: #{nasdaq_predictor_forward.1} parent=0 // pred_region
    _
  $region25: #{nasdaq_predictor_forward.1} parent=0 // pred_fallthru
    _
  // Predicated region
  $region26: #{nasdaq_predictor_forward.1} parent=0 // pred_check
    _
  $region27: #{nasdaq_predictor_forward.1} parent=0 // pred_check_branch
    %26 = sbr.rel (0) target = $region29
  $region28: #{nasdaq_predictor_forward.1} parent=0 // pred_region
    _
  $region29: #{nasdaq_predictor_forward.1} parent=0 // pred_fallthru
    _
  // Predicated region
  $region30: #{nasdaq_predictor_forward.1} parent=0 // pred_check
    _
  $region31: #{nasdaq_predictor_forward.1} parent=0 // pred_check_branch
    %28 = sbr.rel (0) target = $region33
  $region32: #{nasdaq_predictor_forward.1} parent=0 // pred_region
    _
  $region33: #{nasdaq_predictor_forward.1} parent=0 // pred_fallthru
    _
  %v29 = vld [vmem:[%s0] sm:$0xf]
  %v30 = vld [vmem:[%s0 + $0x4] sm:$0xf]
  %v31 = vld [vmem:[%s0 + $0x8] sm:$0xf]
  %v32 = vld [vmem:[%s0 + $0xc] sm:$0xf]
  %v33 = vld [vmem:[%s0 + $0x10] sm:$0xf]
  %v34 = vld [vmem:[%s0 + $0x14] sm:$0xf]
  %v35 = vld [vmem:[%s0 + $0x18] sm:$0xf]
  %v36 = vld [vmem:[%s0 + $0x1c] sm:$0xf]
  %v37 = vld [vmem:[%s1] sm:$0xf]
  %v38 = vld [vmem:[%s3] sm:$0x3]
  %v40 = vlaneseq
  %v41 = vshrl.u32 %v40, 7
  %v42 = vsub.s32 0, %v41
  %v43 = vrot.slane %v38, %v42
  %v44 = vlaneseq
  %v45 = vshrl.u32 %v44, 7
  %v46 = vsub.s32 1, %v45
  %v47 = vrot.slane %v38, %v46
  %v58 = vcombine.low %v29, %v30
  %v59 = vcombine.low %v31, %v32
  %v60 = vcombine.low %v33, %v34
  %v61 = vcombine.low %v35, %v36
  %v64 = vunpack.c.l.s4 1983009808
  %v65 = vunpack.c.0.s8 %v64
  %v66 = vlaneseq
  %v67 = vshrl.u32 %v66, 7
  %v68 = vsub.s32 %v65, %v67
  %v69 = vrot.slane %v37, %v68
  %v70 = vcombine.high %v69, %v69
  %vm71 = vcmask 15360
  %v72 = vsel %vm71, %v58, 0
  %v74 = vsel %vm71, %v59, 0
  %v76 = vsel %vm71, %v60, 0
  %v78 = vsel %vm71, %v61, 0
  %vm80 = vcmask 1041408
  %v81 = vsel %vm80, %v69, 0
  %v83 = vsel %vm80, %v70, 0
  %85 = vmatprep.subr.mxu0 %v83
  %86 = vmatpush1.msra.mxu0 %v81
  %87 = vmatprep.subr.mxu0 0.0
  %88 = vmatpush1.msra.mxu0 0.0
  %89 = vmatprep.subr.mxu0 0.0
  %90 = vmatpush1.msra.mxu0 0.0
  %91 = vmatprep.subr.mxu0 0.0
  %92 = vmatpush1.msra.mxu0 0.0
  %93 = vmatprep.subr.mxu0 0.0
  %94 = vmatpush1.msra.mxu0 0.0
  %95 = vmatprep.subr.mxu0 0.0
  %96 = vmatpush1.msra.mxu0 0.0
  %97 = vmatprep.subr.mxu0 0.0
  %98 = vmatpush1.msra.mxu0 0.0
  %99 = vmatprep.subr.mxu0 0.0
  %100 = vmatpush1.msra.mxu0 0.0
  %101 = vmatprep.subr.mxu0 0.0
  %102 = vmatpush1.msra.mxu0 0.0
  %103 = vmatprep.subr.mxu0 0.0
  %104 = vmatpush1.msra.mxu0 0.0
  %105 = vmatprep.subr.mxu0 0.0
  %106 = vmatpush1.msra.mxu0 0.0
  %107 = vmatprep.subr.mxu0 0.0
  %108 = vmatpush1.msra.mxu0 0.0
  %109 = vmatprep.subr.mxu0 0.0
  %110 = vmatpush1.msra.mxu0 0.0
  %111 = vmatprep.subr.mxu0 0.0
  %112 = vmatpush1.msra.mxu0 0.0
  %113 = vmatprep.subr.mxu0 0.0
  %114 = vmatpush1.msra.mxu0 0.0
  %115 = vmatprep.subr.mxu0 0.0
  %116 = vmatpush1.msra.mxu0 0.0
  %117 = vmatprep.subr.mxu0 0.0
  %118 = vmatpush1.msra.mxu0 0.0
  %119 = vmatprep.subr.mxu0 0.0
  %120 = vmatpush1.msra.mxu0 0.0
  %121 = vmatprep.subr.mxu0 0.0
  %122 = vmatpush1.msra.mxu0 0.0
  %123 = vmatprep.subr.mxu0 0.0
  %124 = vmatpush1.msra.mxu0 0.0
  %125 = vmatprep.subr.mxu0 0.0
  %126 = vmatpush1.msra.mxu0 0.0
  %127 = vmatprep.subr.mxu0 0.0
  %128 = vmatpush1.msra.mxu0 0.0
  %129 = vmatprep.subr.mxu0 0.0
  %130 = vmatpush1.msra.mxu0 0.0
  %131 = vmatprep.subr.mxu0 0.0
  %132 = vmatpush1.msra.mxu0 0.0
  %133 = vmatprep.subr.mxu0 0.0
  %134 = vmatpush1.msra.mxu0 0.0
  %135 = vmatprep.subr.mxu0 0.0
  %136 = vmatpush1.msra.mxu0 0.0
  %137 = vmatprep.subr.mxu0 0.0
  %138 = vmatpush1.msra.mxu0 0.0
  %139 = vmatprep.subr.mxu0 0.0
  %140 = vmatpush1.msra.mxu0 0.0
  %141 = vmatprep.subr.mxu0 0.0
  %142 = vmatpush1.msra.mxu0 0.0
  %143 = vmatprep.subr.mxu0 0.0
  %144 = vmatpush1.msra.mxu0 0.0
  %145 = vmatprep.subr.mxu0 0.0
  %146 = vmatpush1.msra.mxu0 0.0
  %147 = vmatprep.subr.mxu0 0.0
  %148 = vmatpush1.msra.mxu0 0.0
  %149 = vmatprep.mubr.f32.mxu0 0.0
  %150 = vmatmul.mubr.f32.gmra.mrb[0].mxu0 %v72
  %v151 = vpop.f32.mrb[0].mxu0
  %v152 = vadd.f32 %v43, %v151
  %v153 = vpop.f32.mrb[0].mxu0
  %v154 = vadd.f32 %v47, %v153
  %155 = vmatprep.mubr.f32.mxu0 0.0
  %156 = vmatmul.mubr.f32.gmra.mrb[0].mxu0 %v74
  %v157 = vpop.f32.mrb[0].mxu0
  %v158 = vadd.f32 %v43, %v157
  %v159 = vpop.f32.mrb[0].mxu0
  %v160 = vadd.f32 %v47, %v159
  %161 = vmatprep.mubr.f32.mxu0 0.0
  %162 = vmatmul.mubr.f32.gmra.mrb[0].mxu0 %v76
  %v163 = vpop.f32.mrb[0].mxu0
  %v164 = vadd.f32 %v43, %v163
  %v165 = vpop.f32.mrb[0].mxu0
  %v166 = vadd.f32 %v47, %v165
  %167 = vmatprep.mubr.f32.mxu0 0.0
  %168 = vmatmul.mubr.f32.gmra.mrb[0].mxu0 %v78
  %v169 = vpop.f32.mrb[0].mxu0
  %v170 = vadd.f32 %v43, %v169
  %v171 = vpop.f32.mrb[0].mxu0
  %v172 = vadd.f32 %v47, %v171
  %173 = vdwg.mxu0
  %v182 = vcombine.low %v152, %v154
  %v183 = vcombine.high %v152, %v154
  %v184 = vcombine.low %v158, %v160
  %v185 = vcombine.high %v158, %v160
  %v186 = vcombine.low %v164, %v166
  %v187 = vcombine.high %v164, %v166
  %v188 = vcombine.low %v170, %v172
  %v189 = vcombine.high %v170, %v172
  %198 = vst [vmem:[#allocation2] sm:$0xff] %v182
  %199 = vst [vmem:[#allocation2 + $0x8] sm:$0xff] %v183
  %200 = vst [vmem:[#allocation2 + $0x10] sm:$0xff] %v184
  %201 = vst [vmem:[#allocation2 + $0x18] sm:$0xff] %v185
  %202 = vst [vmem:[#allocation2 + $0x20] sm:$0xff] %v186
  %203 = vst [vmem:[#allocation2 + $0x28] sm:$0xff] %v187
  %204 = vst [vmem:[#allocation2 + $0x30] sm:$0xff] %v188
  %205 = vst [vmem:[#allocation2 + $0x38] sm:$0xff] %v189
  %v206 = vld [vmem:[%s5] sm:$0x3]
  %v208 = vlaneseq
  %v209 = vshrl.u32 %v208, 7
  %v210 = vsub.s32 0, %v209
  %v211 = vrot.slane %v206, %v210
  %v212 = vlaneseq
  %v213 = vshrl.u32 %v212, 7
  %v214 = vsub.s32 1, %v213
  %v215 = vrot.slane %v206, %v214
  %v218 = vld [vmem:[#allocation2] sm:$0xff]
  %v219 = vld [vmem:[%s2] sm:$0xff]
  %v220 = vld [vmem:[%s2 + $0x8] sm:$0xff]
  %v221 = vld [vmem:[%s2 + $0x10] sm:$0xff]
  %v222 = vld [vmem:[%s2 + $0x18] sm:$0xff]
  %v223 = vld [vmem:[%s2 + $0x20] sm:$0xff]
  %v224 = vld [vmem:[%s2 + $0x28] sm:$0xff]
  %v225 = vld [vmem:[%s2 + $0x30] sm:$0xff]
  %v226 = vld [vmem:[%s2 + $0x38] sm:$0xff]
  %v227 = vld [vmem:[%s2 + $0x40] sm:$0xff]
  %v228 = vld [vmem:[%s2 + $0x48] sm:$0xff]
  %v229 = vld [vmem:[%s2 + $0x50] sm:$0xff]
  %v230 = vld [vmem:[%s2 + $0x58] sm:$0xff]
  %v231 = vld [vmem:[%s2 + $0x60] sm:$0xff]
  %v232 = vld [vmem:[%s2 + $0x68] sm:$0xff]
  %v233 = vld [vmem:[%s2 + $0x70] sm:$0xff]
  %v234 = vld [vmem:[%s2 + $0x78] sm:$0xff]
  %vm235 = vcmask 523264
  %v237 = vsel %vm235, 0.0, 0
  %239 = vmatprep.subr.mxu0 %v220
  %240 = vmatpush1.msra.mxu0 %v219
  %241 = vmatprep.subr.mxu0 %v222
  %242 = vmatpush1.msra.mxu0 %v221
  %243 = vmatprep.subr.mxu0 %v224
  %244 = vmatpush1.msra.mxu0 %v223
  %245 = vmatprep.subr.mxu0 %v226
  %246 = vmatpush1.msra.mxu0 %v225
  %247 = vmatprep.subr.mxu0 %v228
  %248 = vmatpush1.msra.mxu0 %v227
  %249 = vmatprep.subr.mxu0 %v230
  %250 = vmatpush1.msra.mxu0 %v229
  %251 = vmatprep.subr.mxu0 %v232
  %252 = vmatpush1.msra.mxu0 %v231
  %253 = vmatprep.subr.mxu0 %v234
  %254 = vmatpush1.msra.mxu0 %v233
  %255 = vmatprep.subr.mxu0 0.0
  %256 = vmatpush1.msra.mxu0 0.0
  %257 = vmatprep.subr.mxu0 0.0
  %258 = vmatpush1.msra.mxu0 0.0
  %259 = vmatprep.subr.mxu0 0.0
  %260 = vmatpush1.msra.mxu0 0.0
  %261 = vmatprep.subr.mxu0 0.0
  %262 = vmatpush1.msra.mxu0 0.0
  %263 = vmatprep.subr.mxu0 0.0
  %264 = vmatpush1.msra.mxu0 0.0
  %265 = vmatprep.subr.mxu0 0.0
  %266 = vmatpush1.msra.mxu0 0.0
  %267 = vmatprep.subr.mxu0 0.0
  %268 = vmatpush1.msra.mxu0 0.0
  %269 = vmatprep.subr.mxu0 0.0
  %270 = vmatpush1.msra.mxu0 0.0
  %271 = vmatprep.subr.mxu0 0.0
  %272 = vmatpush1.msra.mxu0 0.0
  %273 = vmatprep.subr.mxu0 0.0
  %274 = vmatpush1.msra.mxu0 0.0
  %275 = vmatprep.subr.mxu0 0.0
  %276 = vmatpush1.msra.mxu0 0.0
  %277 = vmatprep.subr.mxu0 0.0
  %278 = vmatpush1.msra.mxu0 0.0
  %279 = vmatprep.subr.mxu0 0.0
  %280 = vmatpush1.msra.mxu0 0.0
  %281 = vmatprep.subr.mxu0 0.0
  %282 = vmatpush1.msra.mxu0 0.0
  %283 = vmatprep.subr.mxu0 0.0
  %284 = vmatpush1.msra.mxu0 0.0
  %285 = vmatprep.subr.mxu0 0.0
  %286 = vmatpush1.msra.mxu0 0.0
  %287 = vmatprep.subr.mxu0 0.0
  %288 = vmatpush1.msra.mxu0 0.0
  %289 = vmatprep.subr.mxu0 0.0
  %290 = vmatpush1.msra.mxu0 0.0
  %291 = vmatprep.subr.mxu0 0.0
  %292 = vmatpush1.msra.mxu0 0.0
  %293 = vmatprep.subr.mxu0 0.0
  %294 = vmatpush1.msra.mxu0 0.0
  %295 = vmatprep.subr.mxu0 0.0
  %296 = vmatpush1.msra.mxu0 0.0
  %297 = vmatprep.subr.mxu0 0.0
  %298 = vmatpush1.msra.mxu0 0.0
  %299 = vmatprep.subr.mxu0 0.0
  %300 = vmatpush1.msra.mxu0 0.0
  %301 = vmatprep.subr.mxu0 0.0
  %302 = vmatpush1.msra.mxu0 0.0
  %303 = vmatprep.mubr.f32.mxu0 0.0
  %304 = vmatmul.mubr.f32.gmra.mrb[0].mxu0 %v237
  %v305 = vpop.f32.mrb[0].mxu0
  %v306 = vadd.f32 0.0, %v305
  %v307 = vpop.f32.mrb[0].mxu0
  %v308 = vadd.f32 0.0, %v307
  %309 = vdwg.mxu0
  %v312 = vcombine.low %v306, %v308
  %v314 = vadd.f32 %v218, %v312
  %v315 = vxor.u32 %v314, 2147483648
  %v316 = vmul.f32 %v315, 1.442695
  %v317 = vpow.pop %v316
  %v318 = vadd.f32 %v317, 1.0
  %v319 = vrcp.pop %v318
  %v320 = vmul.f32 1.0, %v319
  %v322 = vrot.slane %v314, 4
  %v324 = vtanh.pop %v322
  %325 = vrot.lane.b32.xlu0 %v314, 64
  %v326 = vpop.permute.xlu0 %325
  %v327 = vrot.slane %v326, 4
  %v329 = vxor.u32 %v327, 2147483648
  %v330 = vmul.f32 %v329, 1.442695
  %v331 = vpow.pop %v330
  %v332 = vadd.f32 %v331, 1.0
  %v333 = vrcp.pop %v332
  %v334 = vmul.f32 1.0, %v333
  %v335 = vmul.f32 %v320, 0.0
  %v336 = vmul.f32 %v320, %v324
  %338 = vrot.lane.b32.xlu0 %v336, 64
  %v339 = vpop.permute.xlu0 %338
  %v341 = vadd.f32 %v335, %v339
  %v342 = vtanh.pop %v341
  %344 = vrot.lane.b32.xlu0 %v342, 64
  %v345 = vpop.permute.xlu0 %344
  %v347 = vmul.f32 %v334, %v345
  %v348 = vsel %vm235, %v347, 0.0
  %v349 = vld [vmem:[%s4] sm:$0xff]
  %v350 = vld [vmem:[%s4 + $0x8] sm:$0xff]
  %v351 = vld [vmem:[%s4 + $0x10] sm:$0xff]
  %v352 = vld [vmem:[%s4 + $0x18] sm:$0xff]
  %v353 = vld [vmem:[%s4 + $0x20] sm:$0xff]
  %v354 = vld [vmem:[%s4 + $0x28] sm:$0xff]
  %v355 = vld [vmem:[%s4 + $0x30] sm:$0xff]
  %v356 = vld [vmem:[%s4 + $0x38] sm:$0xff]
  %v357 = vld [vmem:[%s4 + $0x40] sm:$0xff]
  %v358 = vld [vmem:[%s4 + $0x48] sm:$0xff]
  %v359 = vld [vmem:[%s4 + $0x50] sm:$0xff]
  %v360 = vld [vmem:[%s4 + $0x58] sm:$0xff]
  %v361 = vld [vmem:[%s4 + $0x60] sm:$0xff]
  %v362 = vld [vmem:[%s4 + $0x68] sm:$0xff]
  %v363 = vld [vmem:[%s4 + $0x70] sm:$0xff]
  %v364 = vld [vmem:[%s4 + $0x78] sm:$0xff]
  %v365 = vld [vmem:[%s4 + $0x80] sm:$0xff]
  %v366 = vld [vmem:[%s4 + $0x88] sm:$0xff]
  %v367 = vld [vmem:[%s4 + $0x90] sm:$0xff]
  %v368 = vld [vmem:[%s4 + $0x98] sm:$0xff]
  %v369 = vld [vmem:[%s4 + $0xa0] sm:$0xff]
  %v370 = vld [vmem:[%s4 + $0xa8] sm:$0xff]
  %v371 = vld [vmem:[%s4 + $0xb0] sm:$0xff]
  %v372 = vld [vmem:[%s4 + $0xb8] sm:$0xff]
  %v373 = vld [vmem:[%s4 + $0xc0] sm:$0xff]
  %v374 = vld [vmem:[%s4 + $0xc8] sm:$0xff]
  %v375 = vld [vmem:[%s4 + $0xd0] sm:$0xff]
  %v376 = vld [vmem:[%s4 + $0xd8] sm:$0xff]
  %v377 = vld [vmem:[%s4 + $0xe0] sm:$0xff]
  %v378 = vld [vmem:[%s4 + $0xe8] sm:$0xff]
  %v379 = vld [vmem:[%s4 + $0xf0] sm:$0xff]
  %v380 = vld [vmem:[%s4 + $0xf8] sm:$0xff]
  %381 = vmatprep.subr.mxu0 %v350
  %382 = vmatpush1.msra.mxu0 %v349
  %383 = vmatprep.subr.mxu0 %v352
  %384 = vmatpush1.msra.mxu0 %v351
  %385 = vmatprep.subr.mxu0 %v354
  %386 = vmatpush1.msra.mxu0 %v353
  %387 = vmatprep.subr.mxu0 %v356
  %388 = vmatpush1.msra.mxu0 %v355
  %389 = vmatprep.subr.mxu0 %v358
  %390 = vmatpush1.msra.mxu0 %v357
  %391 = vmatprep.subr.mxu0 %v360
  %392 = vmatpush1.msra.mxu0 %v359
  %393 = vmatprep.subr.mxu0 %v362
  %394 = vmatpush1.msra.mxu0 %v361
  %395 = vmatprep.subr.mxu0 %v364
  %396 = vmatpush1.msra.mxu0 %v363
  %397 = vmatprep.subr.mxu0 %v366
  %398 = vmatpush1.msra.mxu0 %v365
  %399 = vmatprep.subr.mxu0 %v368
  %400 = vmatpush1.msra.mxu0 %v367
  %401 = vmatprep.subr.mxu0 %v370
  %402 = vmatpush1.msra.mxu0 %v369
  %403 = vmatprep.subr.mxu0 %v372
  %404 = vmatpush1.msra.mxu0 %v371
  %405 = vmatprep.subr.mxu0 %v374
  %406 = vmatpush1.msra.mxu0 %v373
  %407 = vmatprep.subr.mxu0 %v376
  %408 = vmatpush1.msra.mxu0 %v375
  %409 = vmatprep.subr.mxu0 %v378
  %410 = vmatpush1.msra.mxu0 %v377
  %411 = vmatprep.subr.mxu0 %v380
  %412 = vmatpush1.msra.mxu0 %v379
  %413 = vmatprep.subr.mxu0 0.0
  %414 = vmatpush1.msra.mxu0 0.0
  %415 = vmatprep.subr.mxu0 0.0
  %416 = vmatpush1.msra.mxu0 0.0
  %417 = vmatprep.subr.mxu0 0.0
  %418 = vmatpush1.msra.mxu0 0.0
  %419 = vmatprep.subr.mxu0 0.0
  %420 = vmatpush1.msra.mxu0 0.0
  %421 = vmatprep.subr.mxu0 0.0
  %422 = vmatpush1.msra.mxu0 0.0
  %423 = vmatprep.subr.mxu0 0.0
  %424 = vmatpush1.msra.mxu0 0.0
  %425 = vmatprep.subr.mxu0 0.0
  %426 = vmatpush1.msra.mxu0 0.0
  %427 = vmatprep.subr.mxu0 0.0
  %428 = vmatpush1.msra.mxu0 0.0
  %429 = vmatprep.subr.mxu0 0.0
  %430 = vmatpush1.msra.mxu0 0.0
  %431 = vmatprep.subr.mxu0 0.0
  %432 = vmatpush1.msra.mxu0 0.0
  %433 = vmatprep.subr.mxu0 0.0
  %434 = vmatpush1.msra.mxu0 0.0
  %435 = vmatprep.subr.mxu0 0.0
  %436 = vmatpush1.msra.mxu0 0.0
  %437 = vmatprep.subr.mxu0 0.0
  %438 = vmatpush1.msra.mxu0 0.0
  %439 = vmatprep.subr.mxu0 0.0
  %440 = vmatpush1.msra.mxu0 0.0
  %441 = vmatprep.subr.mxu0 0.0
  %442 = vmatpush1.msra.mxu0 0.0
  %443 = vmatprep.subr.mxu0 0.0
  %444 = vmatpush1.msra.mxu0 0.0
  %445 = vmatprep.mubr.f32.mxu0 0.0
  %446 = vmatmul.mubr.f32.gmra.mrb[0].mxu0 %v348
  %v447 = vpop.f32.mrb[0].mxu0
  %v448 = vadd.f32 %v211, %v447
  %v449 = vpop.f32.mrb[0].mxu0
  %v450 = vadd.f32 %v215, %v449
  %451 = vdwg.mxu0
  %v452 = vxor.u32 %v448, 2147483648
  %v453 = vmul.f32 %v452, 1.442695
  %v454 = vpow.pop %v453
  %v455 = vadd.f32 %v454, 1.0
  %v456 = vrcp.pop %v455
  %v457 = vmul.f32 1.0, %v456
  %v458 = vtanh.pop %v450
  %v459 = vxor.u32 %v450, 2147483648
  %v460 = vmul.f32 %v459, 1.442695
  %v461 = vpow.pop %v460
  %v462 = vadd.f32 %v461, 1.0
  %v463 = vrcp.pop %v462
  %v464 = vmul.f32 1.0, %v463
  %v465 = vmul.f32 %v457, 0.0
  %v466 = vmul.f32 %v457, %v458
  %468 = vrot.lane.b32.xlu0 %v466, 64
  %v469 = vpop.permute.xlu0 %468
  %v471 = vadd.f32 %v465, %v469
  %v472 = vtanh.pop %v471
  %v473 = vmul.f32 %v464, %v472
  %s474 = scalar_lea.vmem [#allocation2], 8
  %v475 = vld [vmem:[%s474] sm:$0xff]
  %v477 = vsel %vm235, %v347, 0
  %479 = vmatprep.subr.mxu0 %v220
  %480 = vmatpush1.msra.mxu0 %v219
  %481 = vmatprep.subr.mxu0 %v222
  %482 = vmatpush1.msra.mxu0 %v221
  %483 = vmatprep.subr.mxu0 %v224
  %484 = vmatpush1.msra.mxu0 %v223
  %485 = vmatprep.subr.mxu0 %v226
  %486 = vmatpush1.msra.mxu0 %v225
  %487 = vmatprep.subr.mxu0 %v228
  %488 = vmatpush1.msra.mxu0 %v227
  %489 = vmatprep.subr.mxu0 %v230
  %490 = vmatpush1.msra.mxu0 %v229
  %491 = vmatprep.subr.mxu0 %v232
  %492 = vmatpush1.msra.mxu0 %v231
  %493 = vmatprep.subr.mxu0 %v234
  %494 = vmatpush1.msra.mxu0 %v233
  %495 = vmatprep.subr.mxu0 0.0
  %496 = vmatpush1.msra.mxu0 0.0
  %497 = vmatprep.subr.mxu0 0.0
  %498 = vmatpush1.msra.mxu0 0.0
  %499 = vmatprep.subr.mxu0 0.0
  %500 = vmatpush1.msra.mxu0 0.0
  %501 = vmatprep.subr.mxu0 0.0
  %502 = vmatpush1.msra.mxu0 0.0
  %503 = vmatprep.subr.mxu0 0.0
  %504 = vmatpush1.msra.mxu0 0.0
  %505 = vmatprep.subr.mxu0 0.0
  %506 = vmatpush1.msra.mxu0 0.0
  %507 = vmatprep.subr.mxu0 0.0
  %508 = vmatpush1.msra.mxu0 0.0
  %509 = vmatprep.subr.mxu0 0.0
  %510 = vmatpush1.msra.mxu0 0.0
  %511 = vmatprep.subr.mxu0 0.0
  %512 = vmatpush1.msra.mxu0 0.0
  %513 = vmatprep.subr.mxu0 0.0
  %514 = vmatpush1.msra.mxu0 0.0
  %515 = vmatprep.subr.mxu0 0.0
  %516 = vmatpush1.msra.mxu0 0.0
  %517 = vmatprep.subr.mxu0 0.0
  %518 = vmatpush1.msra.mxu0 0.0
  %519 = vmatprep.subr.mxu0 0.0
  %520 = vmatpush1.msra.mxu0 0.0
  %521 = vmatprep.subr.mxu0 0.0
  %522 = vmatpush1.msra.mxu0 0.0
  %523 = vmatprep.subr.mxu0 0.0
  %524 = vmatpush1.msra.mxu0 0.0
  %525 = vmatprep.subr.mxu0 0.0
  %526 = vmatpush1.msra.mxu0 0.0
  %527 = vmatprep.subr.mxu0 0.0
  %528 = vmatpush1.msra.mxu0 0.0
  %529 = vmatprep.subr.mxu0 0.0
  %530 = vmatpush1.msra.mxu0 0.0
  %531 = vmatprep.subr.mxu0 0.0
  %532 = vmatpush1.msra.mxu0 0.0
  %533 = vmatprep.subr.mxu0 0.0
  %534 = vmatpush1.msra.mxu0 0.0
  %535 = vmatprep.subr.mxu0 0.0
  %536 = vmatpush1.msra.mxu0 0.0
  %537 = vmatprep.subr.mxu0 0.0
  %538 = vmatpush1.msra.mxu0 0.0
  %539 = vmatprep.subr.mxu0 0.0
  %540 = vmatpush1.msra.mxu0 0.0
  %541 = vmatprep.subr.mxu0 0.0
  %542 = vmatpush1.msra.mxu0 0.0
  %543 = vmatprep.mubr.f32.mxu0 0.0
  %544 = vmatmul.mubr.f32.gmra.mrb[0].mxu0 %v477
  %v545 = vpop.f32.mrb[0].mxu0
  %v546 = vadd.f32 0.0, %v545
  %v547 = vpop.f32.mrb[0].mxu0
  %v548 = vadd.f32 0.0, %v547
  %549 = vdwg.mxu0
  %v552 = vcombine.low %v546, %v548
  %v554 = vadd.f32 %v475, %v552
  %v555 = vxor.u32 %v554, 2147483648
  %v556 = vmul.f32 %v555, 1.442695
  %v557 = vpow.pop %v556
  %v558 = vadd.f32 %v557, 1.0
  %v559 = vrcp.pop %v558
  %v560 = vmul.f32 1.0, %v559
  %v562 = vrot.slane %v554, 4
  %v564 = vtanh.pop %v562
  %565 = vrot.lane.b32.xlu0 %v554, 64
  %v566 = vpop.permute.xlu0 %565
  %v567 = vrot.slane %v566, 4
  %v569 = vxor.u32 %v567, 2147483648
  %v570 = vmul.f32 %v569, 1.442695
  %v571 = vpow.pop %v570
  %v572 = vadd.f32 %v571, 1.0
  %v573 = vrcp.pop %v572
  %v574 = vmul.f32 1.0, %v573
  %v575 = vmul.f32 %v560, %v341
  %v576 = vmul.f32 %v560, %v564
  %578 = vrot.lane.b32.xlu0 %v576, 64
  %v579 = vpop.permute.xlu0 %578
  %v581 = vadd.f32 %v575, %v579
  %v582 = vtanh.pop %v581
  %584 = vrot.lane.b32.xlu0 %v582, 64
  %v585 = vpop.permute.xlu0 %584
  %v587 = vmul.f32 %v574, %v585
  %v588 = vsel %vm235, %v587, %v473
  %589 = vmatprep.subr.mxu0 %v350
  %590 = vmatpush1.msra.mxu0 %v349
  %591 = vmatprep.subr.mxu0 %v352
  %592 = vmatpush1.msra.mxu0 %v351
  %593 = vmatprep.subr.mxu0 %v354
  %594 = vmatpush1.msra.mxu0 %v353
  %595 = vmatprep.subr.mxu0 %v356
  %596 = vmatpush1.msra.mxu0 %v355
  %597 = vmatprep.subr.mxu0 %v358
  %598 = vmatpush1.msra.mxu0 %v357
  %599 = vmatprep.subr.mxu0 %v360
  %600 = vmatpush1.msra.mxu0 %v359
  %601 = vmatprep.subr.mxu0 %v362
  %602 = vmatpush1.msra.mxu0 %v361
  %603 = vmatprep.subr.mxu0 %v364
  %604 = vmatpush1.msra.mxu0 %v363
  %605 = vmatprep.subr.mxu0 %v366
  %606 = vmatpush1.msra.mxu0 %v365
  %607 = vmatprep.subr.mxu0 %v368
  %608 = vmatpush1.msra.mxu0 %v367
  %609 = vmatprep.subr.mxu0 %v370
  %610 = vmatpush1.msra.mxu0 %v369
  %611 = vmatprep.subr.mxu0 %v372
  %612 = vmatpush1.msra.mxu0 %v371
  %613 = vmatprep.subr.mxu0 %v374
  %614 = vmatpush1.msra.mxu0 %v373
  %615 = vmatprep.subr.mxu0 %v376
  %616 = vmatpush1.msra.mxu0 %v375
  %617 = vmatprep.subr.mxu0 %v378
  %618 = vmatpush1.msra.mxu0 %v377
  %619 = vmatprep.subr.mxu0 %v380
  %620 = vmatpush1.msra.mxu0 %v379
  %621 = vmatprep.subr.mxu0 0.0
  %622 = vmatpush1.msra.mxu0 0.0
  %623 = vmatprep.subr.mxu0 0.0
  %624 = vmatpush1.msra.mxu0 0.0
  %625 = vmatprep.subr.mxu0 0.0
  %626 = vmatpush1.msra.mxu0 0.0
  %627 = vmatprep.subr.mxu0 0.0
  %628 = vmatpush1.msra.mxu0 0.0
  %629 = vmatprep.subr.mxu0 0.0
  %630 = vmatpush1.msra.mxu0 0.0
  %631 = vmatprep.subr.mxu0 0.0
  %632 = vmatpush1.msra.mxu0 0.0
  %633 = vmatprep.subr.mxu0 0.0
  %634 = vmatpush1.msra.mxu0 0.0
  %635 = vmatprep.subr.mxu0 0.0
  %636 = vmatpush1.msra.mxu0 0.0
  %637 = vmatprep.subr.mxu0 0.0
  %638 = vmatpush1.msra.mxu0 0.0
  %639 = vmatprep.subr.mxu0 0.0
  %640 = vmatpush1.msra.mxu0 0.0
  %641 = vmatprep.subr.mxu0 0.0
  %642 = vmatpush1.msra.mxu0 0.0
  %643 = vmatprep.subr.mxu0 0.0
  %644 = vmatpush1.msra.mxu0 0.0
  %645 = vmatprep.subr.mxu0 0.0
  %646 = vmatpush1.msra.mxu0 0.0
  %647 = vmatprep.subr.mxu0 0.0
  %648 = vmatpush1.msra.mxu0 0.0
  %649 = vmatprep.subr.mxu0 0.0
  %650 = vmatpush1.msra.mxu0 0.0
  %651 = vmatprep.subr.mxu0 0.0
  %652 = vmatpush1.msra.mxu0 0.0
  %653 = vmatprep.mubr.f32.mxu0 0.0
  %654 = vmatmul.mubr.f32.gmra.mrb[0].mxu0 %v588
  %v655 = vpop.f32.mrb[0].mxu0
  %v656 = vadd.f32 %v211, %v655
  %v657 = vpop.f32.mrb[0].mxu0
  %v658 = vadd.f32 %v215, %v657
  %659 = vdwg.mxu0
  %v660 = vxor.u32 %v656, 2147483648
  %v661 = vmul.f32 %v660, 1.442695
  %v662 = vpow.pop %v661
  %v663 = vadd.f32 %v662, 1.0
  %v664 = vrcp.pop %v663
  %v665 = vmul.f32 1.0, %v664
  %v666 = vtanh.pop %v658
  %v667 = vxor.u32 %v658, 2147483648
  %v668 = vmul.f32 %v667, 1.442695
  %v669 = vpow.pop %v668
  %v670 = vadd.f32 %v669, 1.0
  %v671 = vrcp.pop %v670
  %v672 = vmul.f32 1.0, %v671
  %v673 = vmul.f32 %v665, %v471
  %v674 = vmul.f32 %v665, %v666
  %676 = vrot.lane.b32.xlu0 %v674, 64
  %v677 = vpop.permute.xlu0 %676
  %v679 = vadd.f32 %v673, %v677
  %v680 = vtanh.pop %v679
  %v681 = vmul.f32 %v672, %v680
  %s682 = scalar_lea.vmem [#allocation2], 16
  %v683 = vld [vmem:[%s682] sm:$0xff]
  %v685 = vsel %vm235, %v587, 0
  %687 = vmatprep.subr.mxu0 %v220
  %688 = vmatpush1.msra.mxu0 %v219
  %689 = vmatprep.subr.mxu0 %v222
  %690 = vmatpush1.msra.mxu0 %v221
  %691 = vmatprep.subr.mxu0 %v224
  %692 = vmatpush1.msra.mxu0 %v223
  %693 = vmatprep.subr.mxu0 %v226
  %694 = vmatpush1.msra.mxu0 %v225
  %695 = vmatprep.subr.mxu0 %v228
  %696 = vmatpush1.msra.mxu0 %v227
  %697 = vmatprep.subr.mxu0 %v230
  %698 = vmatpush1.msra.mxu0 %v229
  %699 = vmatprep.subr.mxu0 %v232
  %700 = vmatpush1.msra.mxu0 %v231
  %701 = vmatprep.subr.mxu0 %v234
  %702 = vmatpush1.msra.mxu0 %v233
  %703 = vmatprep.subr.mxu0 0.0
  %704 = vmatpush1.msra.mxu0 0.0
  %705 = vmatprep.subr.mxu0 0.0
  %706 = vmatpush1.msra.mxu0 0.0
  %707 = vmatprep.subr.mxu0 0.0
  %708 = vmatpush1.msra.mxu0 0.0
  %709 = vmatprep.subr.mxu0 0.0
  %710 = vmatpush1.msra.mxu0 0.0
  %711 = vmatprep.subr.mxu0 0.0
  %712 = vmatpush1.msra.mxu0 0.0
  %713 = vmatprep.subr.mxu0 0.0
  %714 = vmatpush1.msra.mxu0 0.0
  %715 = vmatprep.subr.mxu0 0.0
  %716 = vmatpush1.msra.mxu0 0.0
  %717 = vmatprep.subr.mxu0 0.0
  %718 = vmatpush1.msra.mxu0 0.0
  %719 = vmatprep.subr.mxu0 0.0
  %720 = vmatpush1.msra.mxu0 0.0
  %721 = vmatprep.subr.mxu0 0.0
  %722 = vmatpush1.msra.mxu0 0.0
  %723 = vmatprep.subr.mxu0 0.0
  %724 = vmatpush1.msra.mxu0 0.0
  %725 = vmatprep.subr.mxu0 0.0
  %726 = vmatpush1.msra.mxu0 0.0
  %727 = vmatprep.subr.mxu0 0.0
  %728 = vmatpush1.msra.mxu0 0.0
  %729 = vmatprep.subr.mxu0 0.0
  %730 = vmatpush1.msra.mxu0 0.0
  %731 = vmatprep.subr.mxu0 0.0
  %732 = vmatpush1.msra.mxu0 0.0
  %733 = vmatprep.subr.mxu0 0.0
  %734 = vmatpush1.msra.mxu0 0.0
  %735 = vmatprep.subr.mxu0 0.0
  %736 = vmatpush1.msra.mxu0 0.0
  %737 = vmatprep.subr.mxu0 0.0
  %738 = vmatpush1.msra.mxu0 0.0
  %739 = vmatprep.subr.mxu0 0.0
  %740 = vmatpush1.msra.mxu0 0.0
  %741 = vmatprep.subr.mxu0 0.0
  %742 = vmatpush1.msra.mxu0 0.0
  %743 = vmatprep.subr.mxu0 0.0
  %744 = vmatpush1.msra.mxu0 0.0
  %745 = vmatprep.subr.mxu0 0.0
  %746 = vmatpush1.msra.mxu0 0.0
  %747 = vmatprep.subr.mxu0 0.0
  %748 = vmatpush1.msra.mxu0 0.0
  %749 = vmatprep.subr.mxu0 0.0
  %750 = vmatpush1.msra.mxu0 0.0
  %751 = vmatprep.mubr.f32.mxu0 0.0
  %752 = vmatmul.mubr.f32.gmra.mrb[0].mxu0 %v685
  %v753 = vpop.f32.mrb[0].mxu0
  %v754 = vadd.f32 0.0, %v753
  %v755 = vpop.f32.mrb[0].mxu0
  %v756 = vadd.f32 0.0, %v755
  %757 = vdwg.mxu0
  %v760 = vcombine.low %v754, %v756
  %v762 = vadd.f32 %v683, %v760
  %v763 = vxor.u32 %v762, 2147483648
  %v764 = vmul.f32 %v763, 1.442695
  %v765 = vpow.pop %v764
  %v766 = vadd.f32 %v765, 1.0
  %v767 = vrcp.pop %v766
  %v768 = vmul.f32 1.0, %v767
  %v770 = vrot.slane %v762, 4
  %v772 = vtanh.pop %v770
  %773 = vrot.lane.b32.xlu0 %v762, 64
  %v774 = vpop.permute.xlu0 %773
  %v775 = vrot.slane %v774, 4
  %v777 = vxor.u32 %v775, 2147483648
  %v778 = vmul.f32 %v777, 1.442695
  %v779 = vpow.pop %v778
  %v780 = vadd.f32 %v779, 1.0
  %v781 = vrcp.pop %v780
  %v782 = vmul.f32 1.0, %v781
  %v783 = vmul.f32 %v768, %v581
  %v784 = vmul.f32 %v768, %v772
  %786 = vrot.lane.b32.xlu0 %v784, 64
  %v787 = vpop.permute.xlu0 %786
  %v789 = vadd.f32 %v783, %v787
  %v790 = vtanh.pop %v789
  %792 = vrot.lane.b32.xlu0 %v790, 64
  %v793 = vpop.permute.xlu0 %792
  %v795 = vmul.f32 %v782, %v793
  %v796 = vsel %vm235, %v795, %v681
  %797 = vmatprep.subr.mxu0 %v350
  %798 = vmatpush1.msra.mxu0 %v349
  %799 = vmatprep.subr.mxu0 %v352
  %800 = vmatpush1.msra.mxu0 %v351
  %801 = vmatprep.subr.mxu0 %v354
  %802 = vmatpush1.msra.mxu0 %v353
  %803 = vmatprep.subr.mxu0 %v356
  %804 = vmatpush1.msra.mxu0 %v355
  %805 = vmatprep.subr.mxu0 %v358
  %806 = vmatpush1.msra.mxu0 %v357
  %807 = vmatprep.subr.mxu0 %v360
  %808 = vmatpush1.msra.mxu0 %v359
  %809 = vmatprep.subr.mxu0 %v362
  %810 = vmatpush1.msra.mxu0 %v361
  %811 = vmatprep.subr.mxu0 %v364
  %812 = vmatpush1.msra.mxu0 %v363
  %813 = vmatprep.subr.mxu0 %v366
  %814 = vmatpush1.msra.mxu0 %v365
  %815 = vmatprep.subr.mxu0 %v368
  %816 = vmatpush1.msra.mxu0 %v367
  %817 = vmatprep.subr.mxu0 %v370
  %818 = vmatpush1.msra.mxu0 %v369
  %819 = vmatprep.subr.mxu0 %v372
  %820 = vmatpush1.msra.mxu0 %v371
  %821 = vmatprep.subr.mxu0 %v374
  %822 = vmatpush1.msra.mxu0 %v373
  %823 = vmatprep.subr.mxu0 %v376
  %824 = vmatpush1.msra.mxu0 %v375
  %825 = vmatprep.subr.mxu0 %v378
  %826 = vmatpush1.msra.mxu0 %v377
  %827 = vmatprep.subr.mxu0 %v380
  %828 = vmatpush1.msra.mxu0 %v379
  %829 = vmatprep.subr.mxu0 0.0
  %830 = vmatpush1.msra.mxu0 0.0
  %831 = vmatprep.subr.mxu0 0.0
  %832 = vmatpush1.msra.mxu0 0.0
  %833 = vmatprep.subr.mxu0 0.0
  %834 = vmatpush1.msra.mxu0 0.0
  %835 = vmatprep.subr.mxu0 0.0
  %836 = vmatpush1.msra.mxu0 0.0
  %837 = vmatprep.subr.mxu0 0.0
  %838 = vmatpush1.msra.mxu0 0.0
  %839 = vmatprep.subr.mxu0 0.0
  %840 = vmatpush1.msra.mxu0 0.0
  %841 = vmatprep.subr.mxu0 0.0
  %842 = vmatpush1.msra.mxu0 0.0
  %843 = vmatprep.subr.mxu0 0.0
  %844 = vmatpush1.msra.mxu0 0.0
  %845 = vmatprep.subr.mxu0 0.0
  %846 = vmatpush1.msra.mxu0 0.0
  %847 = vmatprep.subr.mxu0 0.0
  %848 = vmatpush1.msra.mxu0 0.0
  %849 = vmatprep.subr.mxu0 0.0
  %850 = vmatpush1.msra.mxu0 0.0
  %851 = vmatprep.subr.mxu0 0.0
  %852 = vmatpush1.msra.mxu0 0.0
  %853 = vmatprep.subr.mxu0 0.0
  %854 = vmatpush1.msra.mxu0 0.0
  %855 = vmatprep.subr.mxu0 0.0
  %856 = vmatpush1.msra.mxu0 0.0
  %857 = vmatprep.subr.mxu0 0.0
  %858 = vmatpush1.msra.mxu0 0.0
  %859 = vmatprep.subr.mxu0 0.0
  %860 = vmatpush1.msra.mxu0 0.0
  %861 = vmatprep.mubr.f32.mxu0 0.0
  %862 = vmatmul.mubr.f32.gmra.mrb[0].mxu0 %v796
  %v863 = vpop.f32.mrb[0].mxu0
  %v864 = vadd.f32 %v211, %v863
  %v865 = vpop.f32.mrb[0].mxu0
  %v866 = vadd.f32 %v215, %v865
  %867 = vdwg.mxu0
  %v868 = vxor.u32 %v864, 2147483648
  %v869 = vmul.f32 %v868, 1.442695
  %v870 = vpow.pop %v869
  %v871 = vadd.f32 %v870, 1.0
  %v872 = vrcp.pop %v871
  %v873 = vmul.f32 1.0, %v872
  %v874 = vtanh.pop %v866
  %v875 = vxor.u32 %v866, 2147483648
  %v876 = vmul.f32 %v875, 1.442695
  %v877 = vpow.pop %v876
  %v878 = vadd.f32 %v877, 1.0
  %v879 = vrcp.pop %v878
  %v880 = vmul.f32 1.0, %v879
  %v881 = vmul.f32 %v873, %v679
  %v882 = vmul.f32 %v873, %v874
  %884 = vrot.lane.b32.xlu0 %v882, 64
  %v885 = vpop.permute.xlu0 %884
  %v887 = vadd.f32 %v881, %v885
  %v888 = vtanh.pop %v887
  %v889 = vmul.f32 %v880, %v888
  %s890 = scalar_lea.vmem [#allocation2], 24
  %v891 = vld [vmem:[%s890] sm:$0xff]
  %v893 = vsel %vm235, %v795, 0
  %895 = vmatprep.subr.mxu0 %v220
  %896 = vmatpush1.msra.mxu0 %v219
  %897 = vmatprep.subr.mxu0 %v222
  %898 = vmatpush1.msra.mxu0 %v221
  %899 = vmatprep.subr.mxu0 %v224
  %900 = vmatpush1.msra.mxu0 %v223
  %901 = vmatprep.subr.mxu0 %v226
  %902 = vmatpush1.msra.mxu0 %v225
  %903 = vmatprep.subr.mxu0 %v228
  %904 = vmatpush1.msra.mxu0 %v227
  %905 = vmatprep.subr.mxu0 %v230
  %906 = vmatpush1.msra.mxu0 %v229
  %907 = vmatprep.subr.mxu0 %v232
  %908 = vmatpush1.msra.mxu0 %v231
  %909 = vmatprep.subr.mxu0 %v234
  %910 = vmatpush1.msra.mxu0 %v233
  %911 = vmatprep.subr.mxu0 0.0
  %912 = vmatpush1.msra.mxu0 0.0
  %913 = vmatprep.subr.mxu0 0.0
  %914 = vmatpush1.msra.mxu0 0.0
  %915 = vmatprep.subr.mxu0 0.0
  %916 = vmatpush1.msra.mxu0 0.0
  %917 = vmatprep.subr.mxu0 0.0
  %918 = vmatpush1.msra.mxu0 0.0
  %919 = vmatprep.subr.mxu0 0.0
  %920 = vmatpush1.msra.mxu0 0.0
  %921 = vmatprep.subr.mxu0 0.0
  %922 = vmatpush1.msra.mxu0 0.0
  %923 = vmatprep.subr.mxu0 0.0
  %924 = vmatpush1.msra.mxu0 0.0
  %925 = vmatprep.subr.mxu0 0.0
  %926 = vmatpush1.msra.mxu0 0.0
  %927 = vmatprep.subr.mxu0 0.0
  %928 = vmatpush1.msra.mxu0 0.0
  %929 = vmatprep.subr.mxu0 0.0
  %930 = vmatpush1.msra.mxu0 0.0
  %931 = vmatprep.subr.mxu0 0.0
  %932 = vmatpush1.msra.mxu0 0.0
  %933 = vmatprep.subr.mxu0 0.0
  %934 = vmatpush1.msra.mxu0 0.0
  %935 = vmatprep.subr.mxu0 0.0
  %936 = vmatpush1.msra.mxu0 0.0
  %937 = vmatprep.subr.mxu0 0.0
  %938 = vmatpush1.msra.mxu0 0.0
  %939 = vmatprep.subr.mxu0 0.0
  %940 = vmatpush1.msra.mxu0 0.0
  %941 = vmatprep.subr.mxu0 0.0
  %942 = vmatpush1.msra.mxu0 0.0
  %943 = vmatprep.subr.mxu0 0.0
  %944 = vmatpush1.msra.mxu0 0.0
  %945 = vmatprep.subr.mxu0 0.0
  %946 = vmatpush1.msra.mxu0 0.0
  %947 = vmatprep.subr.mxu0 0.0
  %948 = vmatpush1.msra.mxu0 0.0
  %949 = vmatprep.subr.mxu0 0.0
  %950 = vmatpush1.msra.mxu0 0.0
  %951 = vmatprep.subr.mxu0 0.0
  %952 = vmatpush1.msra.mxu0 0.0
  %953 = vmatprep.subr.mxu0 0.0
  %954 = vmatpush1.msra.mxu0 0.0
  %955 = vmatprep.subr.mxu0 0.0
  %956 = vmatpush1.msra.mxu0 0.0
  %957 = vmatprep.subr.mxu0 0.0
  %958 = vmatpush1.msra.mxu0 0.0
  %959 = vmatprep.mubr.f32.mxu0 0.0
  %960 = vmatmul.mubr.f32.gmra.mrb[0].mxu0 %v893
  %v961 = vpop.f32.mrb[0].mxu0
  %v962 = vadd.f32 0.0, %v961
  %v963 = vpop.f32.mrb[0].mxu0
  %v964 = vadd.f32 0.0, %v963
  %965 = vdwg.mxu0
  %v968 = vcombine.low %v962, %v964
  %v970 = vadd.f32 %v891, %v968
  %v971 = vxor.u32 %v970, 2147483648
  %v972 = vmul.f32 %v971, 1.442695
  %v973 = vpow.pop %v972
  %v974 = vadd.f32 %v973, 1.0
  %v975 = vrcp.pop %v974
  %v976 = vmul.f32 1.0, %v975
  %v978 = vrot.slane %v970, 4
  %v980 = vtanh.pop %v978
  %981 = vrot.lane.b32.xlu0 %v970, 64
  %v982 = vpop.permute.xlu0 %981
  %v983 = vrot.slane %v982, 4
  %v985 = vxor.u32 %v983, 2147483648
  %v986 = vmul.f32 %v985, 1.442695
  %v987 = vpow.pop %v986
  %v988 = vadd.f32 %v987, 1.0
  %v989 = vrcp.pop %v988
  %v990 = vmul.f32 1.0, %v989
  %v991 = vmul.f32 %v976, %v789
  %v992 = vmul.f32 %v976, %v980
  %994 = vrot.lane.b32.xlu0 %v992, 64
  %v995 = vpop.permute.xlu0 %994
  %v997 = vadd.f32 %v991, %v995
  %v998 = vtanh.pop %v997
  %1000 = vrot.lane.b32.xlu0 %v998, 64
  %v1001 = vpop.permute.xlu0 %1000
  %v1003 = vmul.f32 %v990, %v1001
  %v1004 = vsel %vm235, %v1003, %v889
  %1005 = vmatprep.subr.mxu0 %v350
  %1006 = vmatpush1.msra.mxu0 %v349
  %1007 = vmatprep.subr.mxu0 %v352
  %1008 = vmatpush1.msra.mxu0 %v351
  %1009 = vmatprep.subr.mxu0 %v354
  %1010 = vmatpush1.msra.mxu0 %v353
  %1011 = vmatprep.subr.mxu0 %v356
  %1012 = vmatpush1.msra.mxu0 %v355
  %1013 = vmatprep.subr.mxu0 %v358
  %1014 = vmatpush1.msra.mxu0 %v357
  %1015 = vmatprep.subr.mxu0 %v360
  %1016 = vmatpush1.msra.mxu0 %v359
  %1017 = vmatprep.subr.mxu0 %v362
  %1018 = vmatpush1.msra.mxu0 %v361
  %1019 = vmatprep.subr.mxu0 %v364
  %1020 = vmatpush1.msra.mxu0 %v363
  %1021 = vmatprep.subr.mxu0 %v366
  %1022 = vmatpush1.msra.mxu0 %v365
  %1023 = vmatprep.subr.mxu0 %v368
  %1024 = vmatpush1.msra.mxu0 %v367
  %1025 = vmatprep.subr.mxu0 %v370
  %1026 = vmatpush1.msra.mxu0 %v369
  %1027 = vmatprep.subr.mxu0 %v372
  %1028 = vmatpush1.msra.mxu0 %v371
  %1029 = vmatprep.subr.mxu0 %v374
  %1030 = vmatpush1.msra.mxu0 %v373
  %1031 = vmatprep.subr.mxu0 %v376
  %1032 = vmatpush1.msra.mxu0 %v375
  %1033 = vmatprep.subr.mxu0 %v378
  %1034 = vmatpush1.msra.mxu0 %v377
  %1035 = vmatprep.subr.mxu0 %v380
  %1036 = vmatpush1.msra.mxu0 %v379
  %1037 = vmatprep.subr.mxu0 0.0
  %1038 = vmatpush1.msra.mxu0 0.0
  %1039 = vmatprep.subr.mxu0 0.0
  %1040 = vmatpush1.msra.mxu0 0.0
  %1041 = vmatprep.subr.mxu0 0.0
  %1042 = vmatpush1.msra.mxu0 0.0
  %1043 = vmatprep.subr.mxu0 0.0
  %1044 = vmatpush1.msra.mxu0 0.0
  %1045 = vmatprep.subr.mxu0 0.0
  %1046 = vmatpush1.msra.mxu0 0.0
  %1047 = vmatprep.subr.mxu0 0.0
  %1048 = vmatpush1.msra.mxu0 0.0
  %1049 = vmatprep.subr.mxu0 0.0
  %1050 = vmatpush1.msra.mxu0 0.0
  %1051 = vmatprep.subr.mxu0 0.0
  %1052 = vmatpush1.msra.mxu0 0.0
  %1053 = vmatprep.subr.mxu0 0.0
  %1054 = vmatpush1.msra.mxu0 0.0
  %1055 = vmatprep.subr.mxu0 0.0
  %1056 = vmatpush1.msra.mxu0 0.0
  %1057 = vmatprep.subr.mxu0 0.0
  %1058 = vmatpush1.msra.mxu0 0.0
  %1059 = vmatprep.subr.mxu0 0.0
  %1060 = vmatpush1.msra.mxu0 0.0
  %1061 = vmatprep.subr.mxu0 0.0
  %1062 = vmatpush1.msra.mxu0 0.0
  %1063 = vmatprep.subr.mxu0 0.0
  %1064 = vmatpush1.msra.mxu0 0.0
  %1065 = vmatprep.subr.mxu0 0.0
  %1066 = vmatpush1.msra.mxu0 0.0
  %1067 = vmatprep.subr.mxu0 0.0
  %1068 = vmatpush1.msra.mxu0 0.0
  %1069 = vmatprep.mubr.f32.mxu0 0.0
  %1070 = vmatmul.mubr.f32.gmra.mrb[0].mxu0 %v1004
  %v1071 = vpop.f32.mrb[0].mxu0
  %v1072 = vadd.f32 %v211, %v1071
  %v1073 = vpop.f32.mrb[0].mxu0
  %v1074 = vadd.f32 %v215, %v1073
  %1075 = vdwg.mxu0
  %v1076 = vxor.u32 %v1072, 2147483648
  %v1077 = vmul.f32 %v1076, 1.442695
  %v1078 = vpow.pop %v1077
  %v1079 = vadd.f32 %v1078, 1.0
  %v1080 = vrcp.pop %v1079
  %v1081 = vmul.f32 1.0, %v1080
  %v1082 = vtanh.pop %v1074
  %v1083 = vxor.u32 %v1074, 2147483648
  %v1084 = vmul.f32 %v1083, 1.442695
  %v1085 = vpow.pop %v1084
  %v1086 = vadd.f32 %v1085, 1.0
  %v1087 = vrcp.pop %v1086
  %v1088 = vmul.f32 1.0, %v1087
  %v1089 = vmul.f32 %v1081, %v887
  %v1090 = vmul.f32 %v1081, %v1082
  %1092 = vrot.lane.b32.xlu0 %v1090, 64
  %v1093 = vpop.permute.xlu0 %1092
  %v1095 = vadd.f32 %v1089, %v1093
  %v1096 = vtanh.pop %v1095
  %v1097 = vmul.f32 %v1088, %v1096
  %s1098 = scalar_lea.vmem [#allocation2], 32
  %v1099 = vld [vmem:[%s1098] sm:$0xff]
  %v1101 = vsel %vm235, %v1003, 0
  %1103 = vmatprep.subr.mxu0 %v220
  %1104 = vmatpush1.msra.mxu0 %v219
  %1105 = vmatprep.subr.mxu0 %v222
  %1106 = vmatpush1.msra.mxu0 %v221
  %1107 = vmatprep.subr.mxu0 %v224
  %1108 = vmatpush1.msra.mxu0 %v223
  %1109 = vmatprep.subr.mxu0 %v226
  %1110 = vmatpush1.msra.mxu0 %v225
  %1111 = vmatprep.subr.mxu0 %v228
  %1112 = vmatpush1.msra.mxu0 %v227
  %1113 = vmatprep.subr.mxu0 %v230
  %1114 = vmatpush1.msra.mxu0 %v229
  %1115 = vmatprep.subr.mxu0 %v232
  %1116 = vmatpush1.msra.mxu0 %v231
  %1117 = vmatprep.subr.mxu0 %v234
  %1118 = vmatpush1.msra.mxu0 %v233
  %1119 = vmatprep.subr.mxu0 0.0
  %1120 = vmatpush1.msra.mxu0 0.0
  %1121 = vmatprep.subr.mxu0 0.0
  %1122 = vmatpush1.msra.mxu0 0.0
  %1123 = vmatprep.subr.mxu0 0.0
  %1124 = vmatpush1.msra.mxu0 0.0
  %1125 = vmatprep.subr.mxu0 0.0
  %1126 = vmatpush1.msra.mxu0 0.0
  %1127 = vmatprep.subr.mxu0 0.0
  %1128 = vmatpush1.msra.mxu0 0.0
  %1129 = vmatprep.subr.mxu0 0.0
  %1130 = vmatpush1.msra.mxu0 0.0
  %1131 = vmatprep.subr.mxu0 0.0
  %1132 = vmatpush1.msra.mxu0 0.0
  %1133 = vmatprep.subr.mxu0 0.0
  %1134 = vmatpush1.msra.mxu0 0.0
  %1135 = vmatprep.subr.mxu0 0.0
  %1136 = vmatpush1.msra.mxu0 0.0
  %1137 = vmatprep.subr.mxu0 0.0
  %1138 = vmatpush1.msra.mxu0 0.0
  %1139 = vmatprep.subr.mxu0 0.0
  %1140 = vmatpush1.msra.mxu0 0.0
  %1141 = vmatprep.subr.mxu0 0.0
  %1142 = vmatpush1.msra.mxu0 0.0
  %1143 = vmatprep.subr.mxu0 0.0
  %1144 = vmatpush1.msra.mxu0 0.0
  %1145 = vmatprep.subr.mxu0 0.0
  %1146 = vmatpush1.msra.mxu0 0.0
  %1147 = vmatprep.subr.mxu0 0.0
  %1148 = vmatpush1.msra.mxu0 0.0
  %1149 = vmatprep.subr.mxu0 0.0
  %1150 = vmatpush1.msra.mxu0 0.0
  %1151 = vmatprep.subr.mxu0 0.0
  %1152 = vmatpush1.msra.mxu0 0.0
  %1153 = vmatprep.subr.mxu0 0.0
  %1154 = vmatpush1.msra.mxu0 0.0
  %1155 = vmatprep.subr.mxu0 0.0
  %1156 = vmatpush1.msra.mxu0 0.0
  %1157 = vmatprep.subr.mxu0 0.0
  %1158 = vmatpush1.msra.mxu0 0.0
  %1159 = vmatprep.subr.mxu0 0.0
  %1160 = vmatpush1.msra.mxu0 0.0
  %1161 = vmatprep.subr.mxu0 0.0
  %1162 = vmatpush1.msra.mxu0 0.0
  %1163 = vmatprep.subr.mxu0 0.0
  %1164 = vmatpush1.msra.mxu0 0.0
  %1165 = vmatprep.subr.mxu0 0.0
  %1166 = vmatpush1.msra.mxu0 0.0
  %1167 = vmatprep.mubr.f32.mxu0 0.0
  %1168 = vmatmul.mubr.f32.gmra.mrb[0].mxu0 %v1101
  %v1169 = vpop.f32.mrb[0].mxu0
  %v1170 = vadd.f32 0.0, %v1169
  %v1171 = vpop.f32.mrb[0].mxu0
  %v1172 = vadd.f32 0.0, %v1171
  %1173 = vdwg.mxu0
  %v1176 = vcombine.low %v1170, %v1172
  %v1178 = vadd.f32 %v1099, %v1176
  %v1179 = vxor.u32 %v1178, 2147483648
  %v1180 = vmul.f32 %v1179, 1.442695
  %v1181 = vpow.pop %v1180
  %v1182 = vadd.f32 %v1181, 1.0
  %v1183 = vrcp.pop %v1182
  %v1184 = vmul.f32 1.0, %v1183
  %v1186 = vrot.slane %v1178, 4
  %v1188 = vtanh.pop %v1186
  %1189 = vrot.lane.b32.xlu0 %v1178, 64
  %v1190 = vpop.permute.xlu0 %1189
  %v1191 = vrot.slane %v1190, 4
  %v1193 = vxor.u32 %v1191, 2147483648
  %v1194 = vmul.f32 %v1193, 1.442695
  %v1195 = vpow.pop %v1194
  %v1196 = vadd.f32 %v1195, 1.0
  %v1197 = vrcp.pop %v1196
  %v1198 = vmul.f32 1.0, %v1197
  %v1199 = vmul.f32 %v1184, %v997
  %v1200 = vmul.f32 %v1184, %v1188
  %1202 = vrot.lane.b32.xlu0 %v1200, 64
  %v1203 = vpop.permute.xlu0 %1202
  %v1205 = vadd.f32 %v1199, %v1203
  %v1206 = vtanh.pop %v1205
  %1208 = vrot.lane.b32.xlu0 %v1206, 64
  %v1209 = vpop.permute.xlu0 %1208
  %v1211 = vmul.f32 %v1198, %v1209
  %v1212 = vsel %vm235, %v1211, %v1097
  %1213 = vmatprep.subr.mxu0 %v350
  %1214 = vmatpush1.msra.mxu0 %v349
  %1215 = vmatprep.subr.mxu0 %v352
  %1216 = vmatpush1.msra.mxu0 %v351
  %1217 = vmatprep.subr.mxu0 %v354
  %1218 = vmatpush1.msra.mxu0 %v353
  %1219 = vmatprep.subr.mxu0 %v356
  %1220 = vmatpush1.msra.mxu0 %v355
  %1221 = vmatprep.subr.mxu0 %v358
  %1222 = vmatpush1.msra.mxu0 %v357
  %1223 = vmatprep.subr.mxu0 %v360
  %1224 = vmatpush1.msra.mxu0 %v359
  %1225 = vmatprep.subr.mxu0 %v362
  %1226 = vmatpush1.msra.mxu0 %v361
  %1227 = vmatprep.subr.mxu0 %v364
  %1228 = vmatpush1.msra.mxu0 %v363
  %1229 = vmatprep.subr.mxu0 %v366
  %1230 = vmatpush1.msra.mxu0 %v365
  %1231 = vmatprep.subr.mxu0 %v368
  %1232 = vmatpush1.msra.mxu0 %v367
  %1233 = vmatprep.subr.mxu0 %v370
  %1234 = vmatpush1.msra.mxu0 %v369
  %1235 = vmatprep.subr.mxu0 %v372
  %1236 = vmatpush1.msra.mxu0 %v371
  %1237 = vmatprep.subr.mxu0 %v374
  %1238 = vmatpush1.msra.mxu0 %v373
  %1239 = vmatprep.subr.mxu0 %v376
  %1240 = vmatpush1.msra.mxu0 %v375
  %1241 = vmatprep.subr.mxu0 %v378
  %1242 = vmatpush1.msra.mxu0 %v377
  %1243 = vmatprep.subr.mxu0 %v380
  %1244 = vmatpush1.msra.mxu0 %v379
  %1245 = vmatprep.subr.mxu0 0.0
  %1246 = vmatpush1.msra.mxu0 0.0
  %1247 = vmatprep.subr.mxu0 0.0
  %1248 = vmatpush1.msra.mxu0 0.0
  %1249 = vmatprep.subr.mxu0 0.0
  %1250 = vmatpush1.msra.mxu0 0.0
  %1251 = vmatprep.subr.mxu0 0.0
  %1252 = vmatpush1.msra.mxu0 0.0
  %1253 = vmatprep.subr.mxu0 0.0
  %1254 = vmatpush1.msra.mxu0 0.0
  %1255 = vmatprep.subr.mxu0 0.0
  %1256 = vmatpush1.msra.mxu0 0.0
  %1257 = vmatprep.subr.mxu0 0.0
  %1258 = vmatpush1.msra.mxu0 0.0
  %1259 = vmatprep.subr.mxu0 0.0
  %1260 = vmatpush1.msra.mxu0 0.0
  %1261 = vmatprep.subr.mxu0 0.0
  %1262 = vmatpush1.msra.mxu0 0.0
  %1263 = vmatprep.subr.mxu0 0.0
  %1264 = vmatpush1.msra.mxu0 0.0
  %1265 = vmatprep.subr.mxu0 0.0
  %1266 = vmatpush1.msra.mxu0 0.0
  %1267 = vmatprep.subr.mxu0 0.0
  %1268 = vmatpush1.msra.mxu0 0.0
  %1269 = vmatprep.subr.mxu0 0.0
  %1270 = vmatpush1.msra.mxu0 0.0
  %1271 = vmatprep.subr.mxu0 0.0
  %1272 = vmatpush1.msra.mxu0 0.0
  %1273 = vmatprep.subr.mxu0 0.0
  %1274 = vmatpush1.msra.mxu0 0.0
  %1275 = vmatprep.subr.mxu0 0.0
  %1276 = vmatpush1.msra.mxu0 0.0
  %1277 = vmatprep.mubr.f32.mxu0 0.0
  %1278 = vmatmul.mubr.f32.gmra.mrb[0].mxu0 %v1212
  %v1279 = vpop.f32.mrb[0].mxu0
  %v1280 = vadd.f32 %v211, %v1279
  %v1281 = vpop.f32.mrb[0].mxu0
  %v1282 = vadd.f32 %v215, %v1281
  %1283 = vdwg.mxu0
  %v1284 = vxor.u32 %v1280, 2147483648
  %v1285 = vmul.f32 %v1284, 1.442695
  %v1286 = vpow.pop %v1285
  %v1287 = vadd.f32 %v1286, 1.0
  %v1288 = vrcp.pop %v1287
  %v1289 = vmul.f32 1.0, %v1288
  %v1290 = vtanh.pop %v1282
  %v1291 = vxor.u32 %v1282, 2147483648
  %v1292 = vmul.f32 %v1291, 1.442695
  %v1293 = vpow.pop %v1292
  %v1294 = vadd.f32 %v1293, 1.0
  %v1295 = vrcp.pop %v1294
  %v1296 = vmul.f32 1.0, %v1295
  %v1297 = vmul.f32 %v1289, %v1095
  %v1298 = vmul.f32 %v1289, %v1290
  %1300 = vrot.lane.b32.xlu0 %v1298, 64
  %v1301 = vpop.permute.xlu0 %1300
  %v1303 = vadd.f32 %v1297, %v1301
  %v1304 = vtanh.pop %v1303
  %v1305 = vmul.f32 %v1296, %v1304
  %s1306 = scalar_lea.vmem [#allocation2], 40
  %v1307 = vld [vmem:[%s1306] sm:$0xff]
  %v1309 = vsel %vm235, %v1211, 0
  %1311 = vmatprep.subr.mxu0 %v220
  %1312 = vmatpush1.msra.mxu0 %v219
  %1313 = vmatprep.subr.mxu0 %v222
  %1314 = vmatpush1.msra.mxu0 %v221
  %1315 = vmatprep.subr.mxu0 %v224
  %1316 = vmatpush1.msra.mxu0 %v223
  %1317 = vmatprep.subr.mxu0 %v226
  %1318 = vmatpush1.msra.mxu0 %v225
  %1319 = vmatprep.subr.mxu0 %v228
  %1320 = vmatpush1.msra.mxu0 %v227
  %1321 = vmatprep.subr.mxu0 %v230
  %1322 = vmatpush1.msra.mxu0 %v229
  %1323 = vmatprep.subr.mxu0 %v232
  %1324 = vmatpush1.msra.mxu0 %v231
  %1325 = vmatprep.subr.mxu0 %v234
  %1326 = vmatpush1.msra.mxu0 %v233
  %1327 = vmatprep.subr.mxu0 0.0
  %1328 = vmatpush1.msra.mxu0 0.0
  %1329 = vmatprep.subr.mxu0 0.0
  %1330 = vmatpush1.msra.mxu0 0.0
  %1331 = vmatprep.subr.mxu0 0.0
  %1332 = vmatpush1.msra.mxu0 0.0
  %1333 = vmatprep.subr.mxu0 0.0
  %1334 = vmatpush1.msra.mxu0 0.0
  %1335 = vmatprep.subr.mxu0 0.0
  %1336 = vmatpush1.msra.mxu0 0.0
  %1337 = vmatprep.subr.mxu0 0.0
  %1338 = vmatpush1.msra.mxu0 0.0
  %1339 = vmatprep.subr.mxu0 0.0
  %1340 = vmatpush1.msra.mxu0 0.0
  %1341 = vmatprep.subr.mxu0 0.0
  %1342 = vmatpush1.msra.mxu0 0.0
  %1343 = vmatprep.subr.mxu0 0.0
  %1344 = vmatpush1.msra.mxu0 0.0
  %1345 = vmatprep.subr.mxu0 0.0
  %1346 = vmatpush1.msra.mxu0 0.0
  %1347 = vmatprep.subr.mxu0 0.0
  %1348 = vmatpush1.msra.mxu0 0.0
  %1349 = vmatprep.subr.mxu0 0.0
  %1350 = vmatpush1.msra.mxu0 0.0
  %1351 = vmatprep.subr.mxu0 0.0
  %1352 = vmatpush1.msra.mxu0 0.0
  %1353 = vmatprep.subr.mxu0 0.0
  %1354 = vmatpush1.msra.mxu0 0.0
  %1355 = vmatprep.subr.mxu0 0.0
  %1356 = vmatpush1.msra.mxu0 0.0
  %1357 = vmatprep.subr.mxu0 0.0
  %1358 = vmatpush1.msra.mxu0 0.0
  %1359 = vmatprep.subr.mxu0 0.0
  %1360 = vmatpush1.msra.mxu0 0.0
  %1361 = vmatprep.subr.mxu0 0.0
  %1362 = vmatpush1.msra.mxu0 0.0
  %1363 = vmatprep.subr.mxu0 0.0
  %1364 = vmatpush1.msra.mxu0 0.0
  %1365 = vmatprep.subr.mxu0 0.0
  %1366 = vmatpush1.msra.mxu0 0.0
  %1367 = vmatprep.subr.mxu0 0.0
  %1368 = vmatpush1.msra.mxu0 0.0
  %1369 = vmatprep.subr.mxu0 0.0
  %1370 = vmatpush1.msra.mxu0 0.0
  %1371 = vmatprep.subr.mxu0 0.0
  %1372 = vmatpush1.msra.mxu0 0.0
  %1373 = vmatprep.subr.mxu0 0.0
  %1374 = vmatpush1.msra.mxu0 0.0
  %1375 = vmatprep.mubr.f32.mxu0 0.0
  %1376 = vmatmul.mubr.f32.gmra.mrb[0].mxu0 %v1309
  %v1377 = vpop.f32.mrb[0].mxu0
  %v1378 = vadd.f32 0.0, %v1377
  %v1379 = vpop.f32.mrb[0].mxu0
  %v1380 = vadd.f32 0.0, %v1379
  %1381 = vdwg.mxu0
  %v1384 = vcombine.low %v1378, %v1380
  %v1386 = vadd.f32 %v1307, %v1384
  %v1387 = vxor.u32 %v1386, 2147483648
  %v1388 = vmul.f32 %v1387, 1.442695
  %v1389 = vpow.pop %v1388
  %v1390 = vadd.f32 %v1389, 1.0
  %v1391 = vrcp.pop %v1390
  %v1392 = vmul.f32 1.0, %v1391
  %v1394 = vrot.slane %v1386, 4
  %v1396 = vtanh.pop %v1394
  %1397 = vrot.lane.b32.xlu0 %v1386, 64
  %v1398 = vpop.permute.xlu0 %1397
  %v1399 = vrot.slane %v1398, 4
  %v1401 = vxor.u32 %v1399, 2147483648
  %v1402 = vmul.f32 %v1401, 1.442695
  %v1403 = vpow.pop %v1402
  %v1404 = vadd.f32 %v1403, 1.0
  %v1405 = vrcp.pop %v1404
  %v1406 = vmul.f32 1.0, %v1405
  %v1407 = vmul.f32 %v1392, %v1205
  %v1408 = vmul.f32 %v1392, %v1396
  %1410 = vrot.lane.b32.xlu0 %v1408, 64
  %v1411 = vpop.permute.xlu0 %1410
  %v1413 = vadd.f32 %v1407, %v1411
  %v1414 = vtanh.pop %v1413
  %1416 = vrot.lane.b32.xlu0 %v1414, 64
  %v1417 = vpop.permute.xlu0 %1416
  %v1419 = vmul.f32 %v1406, %v1417
  %v1420 = vsel %vm235, %v1419, %v1305
  %1421 = vmatprep.subr.mxu0 %v350
  %1422 = vmatpush1.msra.mxu0 %v349
  %1423 = vmatprep.subr.mxu0 %v352
  %1424 = vmatpush1.msra.mxu0 %v351
  %1425 = vmatprep.subr.mxu0 %v354
  %1426 = vmatpush1.msra.mxu0 %v353
  %1427 = vmatprep.subr.mxu0 %v356
  %1428 = vmatpush1.msra.mxu0 %v355
  %1429 = vmatprep.subr.mxu0 %v358
  %1430 = vmatpush1.msra.mxu0 %v357
  %1431 = vmatprep.subr.mxu0 %v360
  %1432 = vmatpush1.msra.mxu0 %v359
  %1433 = vmatprep.subr.mxu0 %v362
  %1434 = vmatpush1.msra.mxu0 %v361
  %1435 = vmatprep.subr.mxu0 %v364
  %1436 = vmatpush1.msra.mxu0 %v363
  %1437 = vmatprep.subr.mxu0 %v366
  %1438 = vmatpush1.msra.mxu0 %v365
  %1439 = vmatprep.subr.mxu0 %v368
  %1440 = vmatpush1.msra.mxu0 %v367
  %1441 = vmatprep.subr.mxu0 %v370
  %1442 = vmatpush1.msra.mxu0 %v369
  %1443 = vmatprep.subr.mxu0 %v372
  %1444 = vmatpush1.msra.mxu0 %v371
  %1445 = vmatprep.subr.mxu0 %v374
  %1446 = vmatpush1.msra.mxu0 %v373
  %1447 = vmatprep.subr.mxu0 %v376
  %1448 = vmatpush1.msra.mxu0 %v375
  %1449 = vmatprep.subr.mxu0 %v378
  %1450 = vmatpush1.msra.mxu0 %v377
  %1451 = vmatprep.subr.mxu0 %v380
  %1452 = vmatpush1.msra.mxu0 %v379
  %1453 = vmatprep.subr.mxu0 0.0
  %1454 = vmatpush1.msra.mxu0 0.0
  %1455 = vmatprep.subr.mxu0 0.0
  %1456 = vmatpush1.msra.mxu0 0.0
  %1457 = vmatprep.subr.mxu0 0.0
  %1458 = vmatpush1.msra.mxu0 0.0
  %1459 = vmatprep.subr.mxu0 0.0
  %1460 = vmatpush1.msra.mxu0 0.0
  %1461 = vmatprep.subr.mxu0 0.0
  %1462 = vmatpush1.msra.mxu0 0.0
  %1463 = vmatprep.subr.mxu0 0.0
  %1464 = vmatpush1.msra.mxu0 0.0
  %1465 = vmatprep.subr.mxu0 0.0
  %1466 = vmatpush1.msra.mxu0 0.0
  %1467 = vmatprep.subr.mxu0 0.0
  %1468 = vmatpush1.msra.mxu0 0.0
  %1469 = vmatprep.subr.mxu0 0.0
  %1470 = vmatpush1.msra.mxu0 0.0
  %1471 = vmatprep.subr.mxu0 0.0
  %1472 = vmatpush1.msra.mxu0 0.0
  %1473 = vmatprep.subr.mxu0 0.0
  %1474 = vmatpush1.msra.mxu0 0.0
  %1475 = vmatprep.subr.mxu0 0.0
  %1476 = vmatpush1.msra.mxu0 0.0
  %1477 = vmatprep.subr.mxu0 0.0
  %1478 = vmatpush1.msra.mxu0 0.0
  %1479 = vmatprep.subr.mxu0 0.0
  %1480 = vmatpush1.msra.mxu0 0.0
  %1481 = vmatprep.subr.mxu0 0.0
  %1482 = vmatpush1.msra.mxu0 0.0
  %1483 = vmatprep.subr.mxu0 0.0
  %1484 = vmatpush1.msra.mxu0 0.0
  %1485 = vmatprep.mubr.f32.mxu0 0.0
  %1486 = vmatmul.mubr.f32.gmra.mrb[0].mxu0 %v1420
  %v1487 = vpop.f32.mrb[0].mxu0
  %v1488 = vadd.f32 %v211, %v1487
  %v1489 = vpop.f32.mrb[0].mxu0
  %v1490 = vadd.f32 %v215, %v1489
  %1491 = vdwg.mxu0
  %v1492 = vxor.u32 %v1488, 2147483648
  %v1493 = vmul.f32 %v1492, 1.442695
  %v1494 = vpow.pop %v1493
  %v1495 = vadd.f32 %v1494, 1.0
  %v1496 = vrcp.pop %v1495
  %v1497 = vmul.f32 1.0, %v1496
  %v1498 = vtanh.pop %v1490
  %v1499 = vxor.u32 %v1490, 2147483648
  %v1500 = vmul.f32 %v1499, 1.442695
  %v1501 = vpow.pop %v1500
  %v1502 = vadd.f32 %v1501, 1.0
  %v1503 = vrcp.pop %v1502
  %v1504 = vmul.f32 1.0, %v1503
  %v1505 = vmul.f32 %v1497, %v1303
  %v1506 = vmul.f32 %v1497, %v1498
  %1508 = vrot.lane.b32.xlu0 %v1506, 64
  %v1509 = vpop.permute.xlu0 %1508
  %v1511 = vadd.f32 %v1505, %v1509
  %v1512 = vtanh.pop %v1511
  %v1513 = vmul.f32 %v1504, %v1512
  %s1514 = scalar_lea.vmem [#allocation2], 48
  %v1515 = vld [vmem:[%s1514] sm:$0xff]
  %v1517 = vsel %vm235, %v1419, 0
  %1519 = vmatprep.subr.mxu0 %v220
  %1520 = vmatpush1.msra.mxu0 %v219
  %1521 = vmatprep.subr.mxu0 %v222
  %1522 = vmatpush1.msra.mxu0 %v221
  %1523 = vmatprep.subr.mxu0 %v224
  %1524 = vmatpush1.msra.mxu0 %v223
  %1525 = vmatprep.subr.mxu0 %v226
  %1526 = vmatpush1.msra.mxu0 %v225
  %1527 = vmatprep.subr.mxu0 %v228
  %1528 = vmatpush1.msra.mxu0 %v227
  %1529 = vmatprep.subr.mxu0 %v230
  %1530 = vmatpush1.msra.mxu0 %v229
  %1531 = vmatprep.subr.mxu0 %v232
  %1532 = vmatpush1.msra.mxu0 %v231
  %1533 = vmatprep.subr.mxu0 %v234
  %1534 = vmatpush1.msra.mxu0 %v233
  %1535 = vmatprep.subr.mxu0 0.0
  %1536 = vmatpush1.msra.mxu0 0.0
  %1537 = vmatprep.subr.mxu0 0.0
  %1538 = vmatpush1.msra.mxu0 0.0
  %1539 = vmatprep.subr.mxu0 0.0
  %1540 = vmatpush1.msra.mxu0 0.0
  %1541 = vmatprep.subr.mxu0 0.0
  %1542 = vmatpush1.msra.mxu0 0.0
  %1543 = vmatprep.subr.mxu0 0.0
  %1544 = vmatpush1.msra.mxu0 0.0
  %1545 = vmatprep.subr.mxu0 0.0
  %1546 = vmatpush1.msra.mxu0 0.0
  %1547 = vmatprep.subr.mxu0 0.0
  %1548 = vmatpush1.msra.mxu0 0.0
  %1549 = vmatprep.subr.mxu0 0.0
  %1550 = vmatpush1.msra.mxu0 0.0
  %1551 = vmatprep.subr.mxu0 0.0
  %1552 = vmatpush1.msra.mxu0 0.0
  %1553 = vmatprep.subr.mxu0 0.0
  %1554 = vmatpush1.msra.mxu0 0.0
  %1555 = vmatprep.subr.mxu0 0.0
  %1556 = vmatpush1.msra.mxu0 0.0
  %1557 = vmatprep.subr.mxu0 0.0
  %1558 = vmatpush1.msra.mxu0 0.0
  %1559 = vmatprep.subr.mxu0 0.0
  %1560 = vmatpush1.msra.mxu0 0.0
  %1561 = vmatprep.subr.mxu0 0.0
  %1562 = vmatpush1.msra.mxu0 0.0
  %1563 = vmatprep.subr.mxu0 0.0
  %1564 = vmatpush1.msra.mxu0 0.0
  %1565 = vmatprep.subr.mxu0 0.0
  %1566 = vmatpush1.msra.mxu0 0.0
  %1567 = vmatprep.subr.mxu0 0.0
  %1568 = vmatpush1.msra.mxu0 0.0
  %1569 = vmatprep.subr.mxu0 0.0
  %1570 = vmatpush1.msra.mxu0 0.0
  %1571 = vmatprep.subr.mxu0 0.0
  %1572 = vmatpush1.msra.mxu0 0.0
  %1573 = vmatprep.subr.mxu0 0.0
  %1574 = vmatpush1.msra.mxu0 0.0
  %1575 = vmatprep.subr.mxu0 0.0
  %1576 = vmatpush1.msra.mxu0 0.0
  %1577 = vmatprep.subr.mxu0 0.0
  %1578 = vmatpush1.msra.mxu0 0.0
  %1579 = vmatprep.subr.mxu0 0.0
  %1580 = vmatpush1.msra.mxu0 0.0
  %1581 = vmatprep.subr.mxu0 0.0
  %1582 = vmatpush1.msra.mxu0 0.0
  %1583 = vmatprep.mubr.f32.mxu0 0.0
  %1584 = vmatmul.mubr.f32.gmra.mrb[0].mxu0 %v1517
  %v1585 = vpop.f32.mrb[0].mxu0
  %v1586 = vadd.f32 0.0, %v1585
  %v1587 = vpop.f32.mrb[0].mxu0
  %v1588 = vadd.f32 0.0, %v1587
  %1589 = vdwg.mxu0
  %v1592 = vcombine.low %v1586, %v1588
  %v1594 = vadd.f32 %v1515, %v1592
  %v1595 = vxor.u32 %v1594, 2147483648
  %v1596 = vmul.f32 %v1595, 1.442695
  %v1597 = vpow.pop %v1596
  %v1598 = vadd.f32 %v1597, 1.0
  %v1599 = vrcp.pop %v1598
  %v1600 = vmul.f32 1.0, %v1599
  %v1602 = vrot.slane %v1594, 4
  %v1604 = vtanh.pop %v1602
  %1605 = vrot.lane.b32.xlu0 %v1594, 64
  %v1606 = vpop.permute.xlu0 %1605
  %v1607 = vrot.slane %v1606, 4
  %v1609 = vxor.u32 %v1607, 2147483648
  %v1610 = vmul.f32 %v1609, 1.442695
  %v1611 = vpow.pop %v1610
  %v1612 = vadd.f32 %v1611, 1.0
  %v1613 = vrcp.pop %v1612
  %v1614 = vmul.f32 1.0, %v1613
  %v1615 = vmul.f32 %v1600, %v1413
  %v1616 = vmul.f32 %v1600, %v1604
  %1618 = vrot.lane.b32.xlu0 %v1616, 64
  %v1619 = vpop.permute.xlu0 %1618
  %v1621 = vadd.f32 %v1615, %v1619
  %v1622 = vtanh.pop %v1621
  %1624 = vrot.lane.b32.xlu0 %v1622, 64
  %v1625 = vpop.permute.xlu0 %1624
  %v1627 = vmul.f32 %v1614, %v1625
  %v1628 = vsel %vm235, %v1627, %v1513
  %1629 = vmatprep.subr.mxu0 %v350
  %1630 = vmatpush1.msra.mxu0 %v349
  %1631 = vmatprep.subr.mxu0 %v352
  %1632 = vmatpush1.msra.mxu0 %v351
  %1633 = vmatprep.subr.mxu0 %v354
  %1634 = vmatpush1.msra.mxu0 %v353
  %1635 = vmatprep.subr.mxu0 %v356
  %1636 = vmatpush1.msra.mxu0 %v355
  %1637 = vmatprep.subr.mxu0 %v358
  %1638 = vmatpush1.msra.mxu0 %v357
  %1639 = vmatprep.subr.mxu0 %v360
  %1640 = vmatpush1.msra.mxu0 %v359
  %1641 = vmatprep.subr.mxu0 %v362
  %1642 = vmatpush1.msra.mxu0 %v361
  %1643 = vmatprep.subr.mxu0 %v364
  %1644 = vmatpush1.msra.mxu0 %v363
  %1645 = vmatprep.subr.mxu0 %v366
  %1646 = vmatpush1.msra.mxu0 %v365
  %1647 = vmatprep.subr.mxu0 %v368
  %1648 = vmatpush1.msra.mxu0 %v367
  %1649 = vmatprep.subr.mxu0 %v370
  %1650 = vmatpush1.msra.mxu0 %v369
  %1651 = vmatprep.subr.mxu0 %v372
  %1652 = vmatpush1.msra.mxu0 %v371
  %1653 = vmatprep.subr.mxu0 %v374
  %1654 = vmatpush1.msra.mxu0 %v373
  %1655 = vmatprep.subr.mxu0 %v376
  %1656 = vmatpush1.msra.mxu0 %v375
  %1657 = vmatprep.subr.mxu0 %v378
  %1658 = vmatpush1.msra.mxu0 %v377
  %1659 = vmatprep.subr.mxu0 %v380
  %1660 = vmatpush1.msra.mxu0 %v379
  %1661 = vmatprep.subr.mxu0 0.0
  %1662 = vmatpush1.msra.mxu0 0.0
  %1663 = vmatprep.subr.mxu0 0.0
  %1664 = vmatpush1.msra.mxu0 0.0
  %1665 = vmatprep.subr.mxu0 0.0
  %1666 = vmatpush1.msra.mxu0 0.0
  %1667 = vmatprep.subr.mxu0 0.0
  %1668 = vmatpush1.msra.mxu0 0.0
  %1669 = vmatprep.subr.mxu0 0.0
  %1670 = vmatpush1.msra.mxu0 0.0
  %1671 = vmatprep.subr.mxu0 0.0
  %1672 = vmatpush1.msra.mxu0 0.0
  %1673 = vmatprep.subr.mxu0 0.0
  %1674 = vmatpush1.msra.mxu0 0.0
  %1675 = vmatprep.subr.mxu0 0.0
  %1676 = vmatpush1.msra.mxu0 0.0
  %1677 = vmatprep.subr.mxu0 0.0
  %1678 = vmatpush1.msra.mxu0 0.0
  %1679 = vmatprep.subr.mxu0 0.0
  %1680 = vmatpush1.msra.mxu0 0.0
  %1681 = vmatprep.subr.mxu0 0.0
  %1682 = vmatpush1.msra.mxu0 0.0
  %1683 = vmatprep.subr.mxu0 0.0
  %1684 = vmatpush1.msra.mxu0 0.0
  %1685 = vmatprep.subr.mxu0 0.0
  %1686 = vmatpush1.msra.mxu0 0.0
  %1687 = vmatprep.subr.mxu0 0.0
  %1688 = vmatpush1.msra.mxu0 0.0
  %1689 = vmatprep.subr.mxu0 0.0
  %1690 = vmatpush1.msra.mxu0 0.0
  %1691 = vmatprep.subr.mxu0 0.0
  %1692 = vmatpush1.msra.mxu0 0.0
  %1693 = vmatprep.mubr.f32.mxu0 0.0
  %1694 = vmatmul.mubr.f32.gmra.mrb[0].mxu0 %v1628
  %v1695 = vpop.f32.mrb[0].mxu0
  %v1696 = vadd.f32 %v211, %v1695
  %v1697 = vpop.f32.mrb[0].mxu0
  %v1698 = vadd.f32 %v215, %v1697
  %1699 = vdwg.mxu0
  %v1700 = vxor.u32 %v1696, 2147483648
  %v1701 = vmul.f32 %v1700, 1.442695
  %v1702 = vpow.pop %v1701
  %v1703 = vadd.f32 %v1702, 1.0
  %v1704 = vrcp.pop %v1703
  %v1705 = vmul.f32 1.0, %v1704
  %v1706 = vtanh.pop %v1698
  %v1707 = vxor.u32 %v1698, 2147483648
  %v1708 = vmul.f32 %v1707, 1.442695
  %v1709 = vpow.pop %v1708
  %v1710 = vadd.f32 %v1709, 1.0
  %v1711 = vrcp.pop %v1710
  %v1712 = vmul.f32 1.0, %v1711
  %v1713 = vmul.f32 %v1705, %v1511
  %v1714 = vmul.f32 %v1705, %v1706
  %1716 = vrot.lane.b32.xlu0 %v1714, 64
  %v1717 = vpop.permute.xlu0 %1716
  %v1719 = vadd.f32 %v1713, %v1717
  %v1720 = vtanh.pop %v1719
  %v1721 = vmul.f32 %v1712, %v1720
  %s1722 = scalar_lea.vmem [#allocation2], 56
  %v1723 = vld [vmem:[%s1722] sm:$0xff]
  %v1725 = vsel %vm235, %v1627, 0
  %1727 = vmatprep.subr.mxu0 %v220
  %1728 = vmatpush1.msra.mxu0 %v219
  %1729 = vmatprep.subr.mxu0 %v222
  %1730 = vmatpush1.msra.mxu0 %v221
  %1731 = vmatprep.subr.mxu0 %v224
  %1732 = vmatpush1.msra.mxu0 %v223
  %1733 = vmatprep.subr.mxu0 %v226
  %1734 = vmatpush1.msra.mxu0 %v225
  %1735 = vmatprep.subr.mxu0 %v228
  %1736 = vmatpush1.msra.mxu0 %v227
  %1737 = vmatprep.subr.mxu0 %v230
  %1738 = vmatpush1.msra.mxu0 %v229
  %1739 = vmatprep.subr.mxu0 %v232
  %1740 = vmatpush1.msra.mxu0 %v231
  %1741 = vmatprep.subr.mxu0 %v234
  %1742 = vmatpush1.msra.mxu0 %v233
  %1743 = vmatprep.subr.mxu0 0.0
  %1744 = vmatpush1.msra.mxu0 0.0
  %1745 = vmatprep.subr.mxu0 0.0
  %1746 = vmatpush1.msra.mxu0 0.0
  %1747 = vmatprep.subr.mxu0 0.0
  %1748 = vmatpush1.msra.mxu0 0.0
  %1749 = vmatprep.subr.mxu0 0.0
  %1750 = vmatpush1.msra.mxu0 0.0
  %1751 = vmatprep.subr.mxu0 0.0
  %1752 = vmatpush1.msra.mxu0 0.0
  %1753 = vmatprep.subr.mxu0 0.0
  %1754 = vmatpush1.msra.mxu0 0.0
  %1755 = vmatprep.subr.mxu0 0.0
  %1756 = vmatpush1.msra.mxu0 0.0
  %1757 = vmatprep.subr.mxu0 0.0
  %1758 = vmatpush1.msra.mxu0 0.0
  %1759 = vmatprep.subr.mxu0 0.0
  %1760 = vmatpush1.msra.mxu0 0.0
  %1761 = vmatprep.subr.mxu0 0.0
  %1762 = vmatpush1.msra.mxu0 0.0
  %1763 = vmatprep.subr.mxu0 0.0
  %1764 = vmatpush1.msra.mxu0 0.0
  %1765 = vmatprep.subr.mxu0 0.0
  %1766 = vmatpush1.msra.mxu0 0.0
  %1767 = vmatprep.subr.mxu0 0.0
  %1768 = vmatpush1.msra.mxu0 0.0
  %1769 = vmatprep.subr.mxu0 0.0
  %1770 = vmatpush1.msra.mxu0 0.0
  %1771 = vmatprep.subr.mxu0 0.0
  %1772 = vmatpush1.msra.mxu0 0.0
  %1773 = vmatprep.subr.mxu0 0.0
  %1774 = vmatpush1.msra.mxu0 0.0
  %1775 = vmatprep.subr.mxu0 0.0
  %1776 = vmatpush1.msra.mxu0 0.0
  %1777 = vmatprep.subr.mxu0 0.0
  %1778 = vmatpush1.msra.mxu0 0.0
  %1779 = vmatprep.subr.mxu0 0.0
  %1780 = vmatpush1.msra.mxu0 0.0
  %1781 = vmatprep.subr.mxu0 0.0
  %1782 = vmatpush1.msra.mxu0 0.0
  %1783 = vmatprep.subr.mxu0 0.0
  %1784 = vmatpush1.msra.mxu0 0.0
  %1785 = vmatprep.subr.mxu0 0.0
  %1786 = vmatpush1.msra.mxu0 0.0
  %1787 = vmatprep.subr.mxu0 0.0
  %1788 = vmatpush1.msra.mxu0 0.0
  %1789 = vmatprep.subr.mxu0 0.0
  %1790 = vmatpush1.msra.mxu0 0.0
  %1791 = vmatprep.mubr.f32.mxu0 0.0
  %1792 = vmatmul.mubr.f32.gmra.mrb[0].mxu0 %v1725
  %v1793 = vpop.f32.mrb[0].mxu0
  %v1794 = vadd.f32 0.0, %v1793
  %v1795 = vpop.f32.mrb[0].mxu0
  %v1796 = vadd.f32 0.0, %v1795
  %1797 = vdwg.mxu0
  %v1800 = vcombine.low %v1794, %v1796
  %v1802 = vadd.f32 %v1723, %v1800
  %v1803 = vxor.u32 %v1802, 2147483648
  %v1804 = vmul.f32 %v1803, 1.442695
  %v1805 = vpow.pop %v1804
  %v1806 = vadd.f32 %v1805, 1.0
  %v1807 = vrcp.pop %v1806
  %v1808 = vmul.f32 1.0, %v1807
  %v1810 = vrot.slane %v1802, 4
  %v1812 = vtanh.pop %v1810
  %1813 = vrot.lane.b32.xlu0 %v1802, 64
  %v1814 = vpop.permute.xlu0 %1813
  %v1815 = vrot.slane %v1814, 4
  %v1817 = vxor.u32 %v1815, 2147483648
  %v1818 = vmul.f32 %v1817, 1.442695
  %v1819 = vpow.pop %v1818
  %v1820 = vadd.f32 %v1819, 1.0
  %v1821 = vrcp.pop %v1820
  %v1822 = vmul.f32 1.0, %v1821
  %v1823 = vmul.f32 %v1808, %v1621
  %v1824 = vmul.f32 %v1808, %v1812
  %1826 = vrot.lane.b32.xlu0 %v1824, 64
  %v1827 = vpop.permute.xlu0 %1826
  %v1829 = vadd.f32 %v1823, %v1827
  %v1830 = vtanh.pop %v1829
  %1832 = vrot.lane.b32.xlu0 %v1830, 64
  %v1833 = vpop.permute.xlu0 %1832
  %v1835 = vmul.f32 %v1822, %v1833
  %v1836 = vsel %vm235, %v1835, %v1721
  %1837 = vmatprep.subr.mxu0 %v350
  %1838 = vmatpush1.msra.mxu0 %v349
  %1839 = vmatprep.subr.mxu0 %v352
  %1840 = vmatpush1.msra.mxu0 %v351
  %1841 = vmatprep.subr.mxu0 %v354
  %1842 = vmatpush1.msra.mxu0 %v353
  %1843 = vmatprep.subr.mxu0 %v356
  %1844 = vmatpush1.msra.mxu0 %v355
  %1845 = vmatprep.subr.mxu0 %v358
  %1846 = vmatpush1.msra.mxu0 %v357
  %1847 = vmatprep.subr.mxu0 %v360
  %1848 = vmatpush1.msra.mxu0 %v359
  %1849 = vmatprep.subr.mxu0 %v362
  %1850 = vmatpush1.msra.mxu0 %v361
  %1851 = vmatprep.subr.mxu0 %v364
  %1852 = vmatpush1.msra.mxu0 %v363
  %1853 = vmatprep.subr.mxu0 %v366
  %1854 = vmatpush1.msra.mxu0 %v365
  %1855 = vmatprep.subr.mxu0 %v368
  %1856 = vmatpush1.msra.mxu0 %v367
  %1857 = vmatprep.subr.mxu0 %v370
  %1858 = vmatpush1.msra.mxu0 %v369
  %1859 = vmatprep.subr.mxu0 %v372
  %1860 = vmatpush1.msra.mxu0 %v371
  %1861 = vmatprep.subr.mxu0 %v374
  %1862 = vmatpush1.msra.mxu0 %v373
  %1863 = vmatprep.subr.mxu0 %v376
  %1864 = vmatpush1.msra.mxu0 %v375
  %1865 = vmatprep.subr.mxu0 %v378
  %1866 = vmatpush1.msra.mxu0 %v377
  %1867 = vmatprep.subr.mxu0 %v380
  %1868 = vmatpush1.msra.mxu0 %v379
  %1869 = vmatprep.subr.mxu0 0.0
  %1870 = vmatpush1.msra.mxu0 0.0
  %1871 = vmatprep.subr.mxu0 0.0
  %1872 = vmatpush1.msra.mxu0 0.0
  %1873 = vmatprep.subr.mxu0 0.0
  %1874 = vmatpush1.msra.mxu0 0.0
  %1875 = vmatprep.subr.mxu0 0.0
  %1876 = vmatpush1.msra.mxu0 0.0
  %1877 = vmatprep.subr.mxu0 0.0
  %1878 = vmatpush1.msra.mxu0 0.0
  %1879 = vmatprep.subr.mxu0 0.0
  %1880 = vmatpush1.msra.mxu0 0.0
  %1881 = vmatprep.subr.mxu0 0.0
  %1882 = vmatpush1.msra.mxu0 0.0
  %1883 = vmatprep.subr.mxu0 0.0
  %1884 = vmatpush1.msra.mxu0 0.0
  %1885 = vmatprep.subr.mxu0 0.0
  %1886 = vmatpush1.msra.mxu0 0.0
  %1887 = vmatprep.subr.mxu0 0.0
  %1888 = vmatpush1.msra.mxu0 0.0
  %1889 = vmatprep.subr.mxu0 0.0
  %1890 = vmatpush1.msra.mxu0 0.0
  %1891 = vmatprep.subr.mxu0 0.0
  %1892 = vmatpush1.msra.mxu0 0.0
  %1893 = vmatprep.subr.mxu0 0.0
  %1894 = vmatpush1.msra.mxu0 0.0
  %1895 = vmatprep.subr.mxu0 0.0
  %1896 = vmatpush1.msra.mxu0 0.0
  %1897 = vmatprep.subr.mxu0 0.0
  %1898 = vmatpush1.msra.mxu0 0.0
  %1899 = vmatprep.subr.mxu0 0.0
  %1900 = vmatpush1.msra.mxu0 0.0
  %1901 = vmatprep.mubr.f32.mxu0 0.0
  %1902 = vmatmul.mubr.f32.gmra.mrb[0].mxu0 %v1836
  %v1903 = vpop.f32.mrb[0].mxu0
  %v1904 = vadd.f32 %v211, %v1903
  %v1905 = vpop.f32.mrb[0].mxu0
  %v1906 = vadd.f32 %v215, %v1905
  %1907 = vdwg.mxu0
  %v1908 = vxor.u32 %v1904, 2147483648
  %v1909 = vmul.f32 %v1908, 1.442695
  %v1910 = vpow.pop %v1909
  %v1911 = vadd.f32 %v1910, 1.0
  %v1912 = vrcp.pop %v1911
  %v1913 = vmul.f32 1.0, %v1912
  %v1914 = vtanh.pop %v1906
  %v1915 = vxor.u32 %v1906, 2147483648
  %v1916 = vmul.f32 %v1915, 1.442695
  %v1917 = vpow.pop %v1916
  %v1918 = vadd.f32 %v1917, 1.0
  %v1919 = vrcp.pop %v1918
  %v1920 = vmul.f32 1.0, %v1919
  %v1921 = vmul.f32 %v1913, %v1719
  %v1922 = vmul.f32 %v1913, %v1914
  %1924 = vrot.lane.b32.xlu0 %v1922, 64
  %v1925 = vpop.permute.xlu0 %1924
  %v1927 = vadd.f32 %v1921, %v1925
  %v1928 = vtanh.pop %v1927
  %v1929 = vmul.f32 %v1920, %v1928
  %v1930 = vld [vmem:[%s6] sm:$0xff]
  %v1931 = vld [vmem:[%s6 + $0x8] sm:$0xff]
  %v1932 = vld [vmem:[%s6 + $0x10] sm:$0xff]
  %v1933 = vld [vmem:[%s6 + $0x18] sm:$0xff]
  %v1934 = vld [vmem:[%s6 + $0x20] sm:$0xff]
  %v1935 = vld [vmem:[%s6 + $0x28] sm:$0xff]
  %v1936 = vld [vmem:[%s6 + $0x30] sm:$0xff]
  %v1937 = vld [vmem:[%s6 + $0x38] sm:$0xff]
  %v1938 = vld [vmem:[%s7] sm:$0x1]
  %v1940 = vlaneseq
  %v1941 = vshrl.u32 %v1940, 7
  %v1942 = vsub.s32 0, %v1941
  %v1943 = vrot.slane %v1938, %v1942
  %1946 = vrot.lane.b32.xlu0 %v1929, 64
  %v1947 = vpop.permute.xlu0 %1946
  %v1948 = vsel %vm235, %v1947, 0
  %1950 = vmatprep.subr.mxu0 0.0
  %1951 = vmatpush1.msra.mxu0 %v1930
  %1952 = vmatprep.subr.mxu0 0.0
  %1953 = vmatpush1.msra.mxu0 %v1931
  %1954 = vmatprep.subr.mxu0 0.0
  %1955 = vmatpush1.msra.mxu0 %v1932
  %1956 = vmatprep.subr.mxu0 0.0
  %1957 = vmatpush1.msra.mxu0 %v1933
  %1958 = vmatprep.subr.mxu0 0.0
  %1959 = vmatpush1.msra.mxu0 %v1934
  %1960 = vmatprep.subr.mxu0 0.0
  %1961 = vmatpush1.msra.mxu0 %v1935
  %1962 = vmatprep.subr.mxu0 0.0
  %1963 = vmatpush1.msra.mxu0 %v1936
  %1964 = vmatprep.subr.mxu0 0.0
  %1965 = vmatpush1.msra.mxu0 %v1937
  %1966 = vmatprep.subr.mxu0 0.0
  %1967 = vmatpush1.msra.mxu0 0.0
  %1968 = vmatprep.subr.mxu0 0.0
  %1969 = vmatpush1.msra.mxu0 0.0
  %1970 = vmatprep.subr.mxu0 0.0
  %1971 = vmatpush1.msra.mxu0 0.0
  %1972 = vmatprep.subr.mxu0 0.0
  %1973 = vmatpush1.msra.mxu0 0.0
  %1974 = vmatprep.subr.mxu0 0.0
  %1975 = vmatpush1.msra.mxu0 0.0
  %1976 = vmatprep.subr.mxu0 0.0
  %1977 = vmatpush1.msra.mxu0 0.0
  %1978 = vmatprep.subr.mxu0 0.0
  %1979 = vmatpush1.msra.mxu0 0.0
  %1980 = vmatprep.subr.mxu0 0.0
  %1981 = vmatpush1.msra.mxu0 0.0
  %1982 = vmatprep.subr.mxu0 0.0
  %1983 = vmatpush1.msra.mxu0 0.0
  %1984 = vmatprep.subr.mxu0 0.0
  %1985 = vmatpush1.msra.mxu0 0.0
  %1986 = vmatprep.subr.mxu0 0.0
  %1987 = vmatpush1.msra.mxu0 0.0
  %1988 = vmatprep.subr.mxu0 0.0
  %1989 = vmatpush1.msra.mxu0 0.0
  %1990 = vmatprep.subr.mxu0 0.0
  %1991 = vmatpush1.msra.mxu0 0.0
  %1992 = vmatprep.subr.mxu0 0.0
  %1993 = vmatpush1.msra.mxu0 0.0
  %1994 = vmatprep.subr.mxu0 0.0
  %1995 = vmatpush1.msra.mxu0 0.0
  %1996 = vmatprep.subr.mxu0 0.0
  %1997 = vmatpush1.msra.mxu0 0.0
  %1998 = vmatprep.subr.mxu0 0.0
  %1999 = vmatpush1.msra.mxu0 0.0
  %2000 = vmatprep.subr.mxu0 0.0
  %2001 = vmatpush1.msra.mxu0 0.0
  %2002 = vmatprep.subr.mxu0 0.0
  %2003 = vmatpush1.msra.mxu0 0.0
  %2004 = vmatprep.subr.mxu0 0.0
  %2005 = vmatpush1.msra.mxu0 0.0
  %2006 = vmatprep.subr.mxu0 0.0
  %2007 = vmatpush1.msra.mxu0 0.0
  %2008 = vmatprep.subr.mxu0 0.0
  %2009 = vmatpush1.msra.mxu0 0.0
  %2010 = vmatprep.subr.mxu0 0.0
  %2011 = vmatpush1.msra.mxu0 0.0
  %2012 = vmatprep.subr.mxu0 0.0
  %2013 = vmatpush1.msra.mxu0 0.0
  %2014 = vmatprep.mubr.f32.mxu0 0.0
  %2015 = vmatmul.mubr.f32.gmra.mrb[0].mxu0 %v1948
  %v2016 = vpop.f32.mrb[0].mxu0
  %v2017 = vadd.f32 %v1943, %v2016
  %v2018 = vpop.f32.mrb[0].mxu0
  %2019 = vdwg.mxu0
  %vm2020 = vcmask 11264
  %2021 = vst.msk [vmem:[%s8] sm:$0xf] %vm2020, %v2017
  // Predicated region
  $region34: #{nasdaq_predictor_forward.1} parent=0 // pred_check
    _
  $region35: #{nasdaq_predictor_forward.1} parent=0 // pred_check_branch
    %2023 = sbr.rel (0) target = $region37
  $region36: #{nasdaq_predictor_forward.1} parent=0 // pred_region
    _
  $region37: #{nasdaq_predictor_forward.1} parent=0 // pred_fallthru
    _
  // Predicated region
  $region38: #{nasdaq_predictor_forward.1} parent=0 // pred_check
    _
  $region39: #{nasdaq_predictor_forward.1} parent=0 // pred_check_branch
    %2025 = sbr.rel (0) target = $region41
  $region40: #{nasdaq_predictor_forward.1} parent=0 // pred_region
    _
  $region41: #{nasdaq_predictor_forward.1} parent=0 // pred_fallthru
    _

</llo_original>
